<compile_context>
chip_gen: v7x
topology: tpu7x:2x2x1
jax: 0.10.0
libtpu: 0.0.40
codegen_flags: <defaults>
</compile_context>

<pallas_src>
from typing import NamedTuple

import jax
import jax.numpy as jnp
from jax import lax
from jax.experimental import pallas as pl
from jax.experimental.pallas import tpu as pltpu

# Set to jnp.bfloat16 on v6e/v7x for 2x MXU throughput and half the weight
# traffic (accumulation stays f32 via preferred_element_type).  Keep f32 on
# v5e (no bf16 VPU/EUP) or when bit-exact f32 matmuls are required.
MXU_DTYPE = jnp.float32

_LANE = 128
_SUBLANE = 8


def _round_up(x: int, m: int) -> int:
    return ((x + m - 1) // m) * m


class _Cfg(NamedTuple):
    L: int
    B: int
    B_pad: int
    E: int
    E_pad: int
    H: int
    H_pad: int
    V: int
    V_pad: int
    Vr_pad: int
    T: int
    EOS: int
    is_tf: bool
    in_widths: tuple   # padded x-input width per layer (E_pad, H_pad, H_pad, ...)
    mxu_dtype: object


# ------------------------------ fused kernel --------------------------------

def _make_decode_kernel(cfg: _Cfg):
    L, B_pad, H_pad, V_pad = cfg.L, cfg.B_pad, cfg.H_pad, cfg.V_pad

    def kernel(*refs):
        tok_in_ref, h0_ref, emb_ref = refs[:3]
        w_refs = [refs[3 + 2 * l] for l in range(L)]
        b_refs = [refs[3 + 2 * l + 1] for l in range(L)]
        w_out_ref = refs[3 + 2 * L]
        b_out_ref = refs[3 + 2 * L + 1]
        y_out_ref = refs[3 + 2 * L + 2]
        h_out_ref = refs[3 + 2 * L + 3]
        h_scr, fin_scr, tok_scr = refs[3 + 2 * L + 4:]

        t = pl.program_id(0)

        @pl.when(t == 0)
        def _init():
            h_scr[...] = h0_ref[...]
            row = lax.broadcasted_iota(jnp.int32, (B_pad, _LANE), 0)
            # Padded batch rows start "finished" so they never block the
            # all-finished (early-break) mask.
            fin_scr[...] = jnp.where(row < cfg.B, 0.0, 1.0).astype(jnp.float32)
            tok_scr[...] = tok_in_ref[0]

        # done == the reference loop would already have broken before step t
        # (all rows finished at the end of an earlier step).
        done_row = jnp.min(fin_scr[...], axis=0, keepdims=True)          # (1, 128)
        done_b = jnp.broadcast_to(done_row, (B_pad, _LANE))[:, 0:1]      # (B_pad, 1)
        live = done_b < 0.5

        # -------- input token -> relu(embedding) via one-hot matmul ---------
        tok = tok_in_ref[0] if cfg.is_tf else tok_scr[...]               # (B_pad, 128)
        tok_col = tok[:, 0:1]
        vrow = lax.broadcasted_iota(jnp.int32, (B_pad, cfg.Vr_pad), 1)
        onehot = (vrow == tok_col).astype(cfg.mxu_dtype)
        emb = jnp.maximum(
            jnp.dot(onehot, emb_ref[...], preferred_element_type=jnp.float32),
            0.0)                                                          # (B_pad, E_pad)

        # ------------------------------ GRU stack ---------------------------
        x_in = emb
        for l in range(L):
            xw = cfg.in_widths[l]
            h_l = h_scr[l]                                                # (B_pad, H_pad)
            # Gate pre-activations.  Weight layout per layer:
            #   rows [0:xw]          -> W_ih for columns [r | z | gi_n |  0  ]
            #   rows [xw:xw+H_pad]   -> W_hh for columns [r | z |  0   | gh_n]
            # Two matmuls on static, 128-aligned ref slices (no staging copy).
            g = (jnp.dot(x_in.astype(cfg.mxu_dtype), w_refs[l][0:xw, :],
                         preferred_element_type=jnp.float32)
                 + jnp.dot(h_l.astype(cfg.mxu_dtype), w_refs[l][xw:xw + H_pad, :],
                           preferred_element_type=jnp.float32)
                 + b_refs[l][...])                                        # (B_pad, 4*H_pad)
            r = jax.nn.sigmoid(g[:, 0:H_pad])
            z = jax.nn.sigmoid(g[:, H_pad:2 * H_pad])
            n = jnp.tanh(g[:, 2 * H_pad:3 * H_pad] + r * g[:, 3 * H_pad:4 * H_pad])
            h_new = (1.0 - z) * n + z * h_l
            h_scr[l] = h_new
            x_in = h_new

        # --------------------------- output projection ----------------------
        # TODO(synk): for a real vocab (tens of thousands) tile this projection
        # over an extra "parallel" grid axis (512-1024 lane blocks) instead of
        # keeping the full (H_pad, V_pad) w_out VMEM-resident (v7x: 64 MiB).
        y = jnp.dot(x_in.astype(cfg.mxu_dtype), w_out_ref[...],
                    preferred_element_type=jnp.float32) + b_out_ref[...]  # (B_pad, V_pad)

        y_out_ref[0] = jnp.where(live, y, 0.0)
        h_out_ref[0] = jnp.where(live, x_in, 0.0)

        # ------------------ argmax / EOS / greedy feedback -------------------
        m = jnp.max(y, axis=-1, keepdims=True)
        lane = lax.broadcasted_iota(jnp.int32, (B_pad, V_pad), 1).astype(jnp.float32)
        pred = jnp.min(jnp.where(y == m, lane, float(V_pad)),
                       axis=-1, keepdims=True).astype(jnp.int32)          # (B_pad, 1)

        fin_scr[...] = jnp.maximum(
            fin_scr[...],
            jnp.where(pred == cfg.EOS, 1.0, 0.0).astype(jnp.float32))

        if not cfg.is_tf:  # greedy decoding: feed the prediction back
            tok_scr[...] = jnp.broadcast_to(pred, (B_pad, _LANE))

    return kernel


def _decode_pallas(cfg: _Cfg, params, toks_pad, h0_pad):
    L, T = cfg.L, cfg.T
    B_pad, H_pad, V_pad = cfg.B_pad, cfg.H_pad, cfg.V_pad
    E_pad, Vr_pad = cfg.E_pad, cfg.Vr_pad

    const2 = lambda t: (0, 0)

    in_specs = [
        pl.BlockSpec((1, B_pad, _LANE), lambda t: (t, 0, 0)),   # per-step TF tokens
        pl.BlockSpec((L, B_pad, H_pad), lambda t: (0, 0, 0)),   # initial hidden
        pl.BlockSpec((Vr_pad, E_pad), const2),                  # embedding table
    ]
    inputs = [toks_pad, h0_pad, params['embedding']]
    for l in range(L):
        in_specs.append(pl.BlockSpec((cfg.in_widths[l] + H_pad, 4 * H_pad), const2))
        in_specs.append(pl.BlockSpec((1, 4 * H_pad), const2))
        inputs += [params[f'w_big_{l}'], params[f'b_big_{l}']]
    in_specs += [pl.BlockSpec((H_pad, V_pad), const2),
                 pl.BlockSpec((1, V_pad), const2)]
    inputs += [params['w_out'], params['b_out']]

    out_specs = [
        pl.BlockSpec((1, B_pad, V_pad), lambda t: (t, 0, 0)),
        pl.BlockSpec((1, B_pad, H_pad), lambda t: (t, 0, 0)),
    ]
    out_shape = (jax.ShapeDtypeStruct((T, B_pad, V_pad), jnp.float32),
                 jax.ShapeDtypeStruct((T, B_pad, H_pad), jnp.float32))

    scratch_shapes = [
        pltpu.VMEM((L, B_pad, H_pad), jnp.float32),   # hidden state, persists across t
        pltpu.VMEM((B_pad, _LANE), jnp.float32),      # has_finished mask
        pltpu.VMEM((B_pad, _LANE), jnp.int32),        # greedy-fed token (non-TF)
    ]

    # advisory cost estimate for XLA scheduling around the custom call
    flops_step = 2 * B_pad * Vr_pad * E_pad + 2 * B_pad * H_pad * V_pad
    for l in range(L):
        flops_step += 2 * B_pad * (cfg.in_widths[l] + H_pad) * 4 * H_pad
    trans_step = 3 * L * B_pad * H_pad
    weight_bytes = sum(int(x.size) * x.dtype.itemsize for x in inputs)
    out_bytes = 4 * T * B_pad * (V_pad + H_pad)
    cost = pl.CostEstimate(flops=T * flops_step,
                           transcendentals=T * trans_step,
                           bytes_accessed=weight_bytes + out_bytes)

    return pl.pallas_call(
        _make_decode_kernel(cfg),
        out_shape=out_shape,
        grid_spec=pltpu.PrefetchScalarGridSpec(
            num_scalar_prefetch=0,
            grid=(T,),
            in_specs=in_specs,
            out_specs=out_specs,
            scratch_shapes=scratch_shapes),
        compiler_params=pltpu.CompilerParams(
            dimension_semantics=("arbitrary",),      # time recurrence is sequential
            vmem_limit_bytes=32 * 1024 * 1024),
        cost_estimate=cost,
    )(*inputs)


# ------------------------------ parameters ----------------------------------

def init_params(key, hparams):
    """Padded + gate-fused decoder parameters (PyTorch-style init)."""
    V = hparams['dec_vocab_size']
    E = hparams['dec_embedding_size']
    H = hparams['dec_hidden_size']
    L = hparams['dec_num_layers']

    E_pad = _round_up(E, _LANE)
    H_pad = _round_up(H, _LANE)
    V_pad = _round_up(V, _LANE)
    Vr_pad = _round_up(V, _LANE)

    k = float(H) ** -0.5  # PyTorch GRU / Linear default init bound
    keys = jax.random.split(key, 4 * L + 3)

    emb = jax.random.normal(keys[0], (V, E), jnp.float32)        # nn.Embedding ~ N(0,1)
    params = {'embedding':
              jnp.zeros((Vr_pad, E_pad), jnp.float32).at[:V, :E].set(emb).astype(MXU_DTYPE)}
    idx = 1
    for l in range(L):
        in_size = E if l == 0 else H
        xw = E_pad if l == 0 else H_pad
        w_ih = jax.random.uniform(keys[idx], (in_size, 3 * H), jnp.float32, -k, k); idx += 1
        w_hh = jax.random.uniform(keys[idx], (H, 3 * H), jnp.float32, -k, k); idx += 1
        b_ih = jax.random.uniform(keys[idx], (3 * H,), jnp.float32, -k, k); idx += 1
        b_hh = jax.random.uniform(keys[idx], (3 * H,), jnp.float32, -k, k); idx += 1

        # Fused weight: rows [0:xw] = W_ih, rows [xw:xw+H_pad] = W_hh,
        # column layout [r | z | gi_n | gh_n], each H_pad wide.
        w_big = jnp.zeros((xw + H_pad, 4 * H_pad), jnp.float32)
        w_big = w_big.at[:in_size, 0:H].set(w_ih[:, 0:H])
        w_big = w_big.at[:in_size, H_pad:H_pad + H].set(w_ih[:, H:2 * H])
        w_big = w_big.at[:in_size, 2 * H_pad:2 * H_pad + H].set(w_ih[:, 2 * H:3 * H])
        w_big = w_big.at[xw:xw + H, 0:H].set(w_hh[:, 0:H])
        w_big = w_big.at[xw:xw + H, H_pad:H_pad + H].set(w_hh[:, H:2 * H])
        w_big = w_big.at[xw:xw + H, 3 * H_pad:3 * H_pad + H].set(w_hh[:, 2 * H:3 * H])

        b_big = jnp.zeros((1, 4 * H_pad), jnp.float32)
        b_big = b_big.at[0, 0:H].set(b_ih[0:H] + b_hh[0:H])                    # r (pre-summed)
        b_big = b_big.at[0, H_pad:H_pad + H].set(b_ih[H:2 * H] + b_hh[H:2 * H])  # z (pre-summed)
        b_big = b_big.at[0, 2 * H_pad:2 * H_pad + H].set(b_ih[2 * H:3 * H])      # gi_n bias
        b_big = b_big.at[0, 3 * H_pad:3 * H_pad + H].set(b_hh[2 * H:3 * H])      # gh_n bias

        params[f'w_big_{l}'] = w_big.astype(MXU_DTYPE)
        params[f'b_big_{l}'] = b_big

    w_out = jax.random.uniform(keys[idx], (H, V), jnp.float32, -k, k); idx += 1
    b_out = jax.random.uniform(keys[idx], (V,), jnp.float32, -k, k)
    params['w_out'] = (jnp.zeros((H_pad, V_pad), jnp.float32)
                       .at[:H, :V].set(w_out).astype(MXU_DTYPE))
    # Padded vocab columns get a very negative bias so the in-kernel argmax
    # (EOS tracking / greedy feedback) can never pick a padded column.
    params['b_out'] = jnp.full((1, V_pad), -1e30, jnp.float32).at[0, :V].set(b_out)
    return params


# ------------------------------ forward pass ---------------------------------

def gru_decoder_forward(params, dec_input, tf_ratio, hparams, tf_draw=0.5):
    # TODO(synk): `random.random() < tf_ratio` in the reference is host-side RNG;
    # modeled here with the deterministic `tf_draw` stand-in.
    is_tf = bool(tf_draw < tf_ratio)

    B = int(dec_input['encoder_output'].shape[0])
    E = hparams['dec_embedding_size']
    H = hparams['dec_hidden_size']
    V = hparams['dec_vocab_size']
    L = hparams['dec_num_layers']
    EOS = hparams['dec_EOS_idx']
    T = int(dec_input['target'].shape[1]) if is_tf else int(hparams['dec_max_gen_length'])

    cfg = _Cfg(L=L, B=B, B_pad=_round_up(B, _SUBLANE),
               E=E, E_pad=_round_up(E, _LANE),
               H=H, H_pad=_round_up(H, _LANE),
               V=V, V_pad=_round_up(V, _LANE), Vr_pad=_round_up(V, _LANE),
               T=T, EOS=EOS, is_tf=is_tf,
               in_widths=tuple(_round_up(E, _LANE) if l == 0 else _round_up(H, _LANE)
                               for l in range(L)),
               mxu_dtype=MXU_DTYPE)

    @jax.jit
    def run(params, x0, target, enc_last_state):
        # get_step_input: h = transpose(encoder_last_state, 0, 1) -> (L, B, H)
        h0 = jnp.transpose(enc_last_state, (1, 0, 2))
        h0_pad = (jnp.zeros((L, cfg.B_pad, cfg.H_pad), jnp.float32)
                  .at[:, :B, :H].set(h0))

        # Input token for step t: x at t==0, target[:, t-1] under teacher
        # forcing (greedy-fed tokens are produced inside the kernel).
        x0i = x0[:, 0].astype(jnp.int32)
        if is_tf:
            toks = jnp.concatenate(
                [x0i[None, :], jnp.transpose(target[:, :T - 1]).astype(jnp.int32)],
                axis=0)                                            # (T, B)
        else:
            toks = jnp.zeros((T, B), jnp.int32).at[0].set(x0i)
        toks_pad = (jnp.zeros((T, cfg.B_pad, _LANE), jnp.int32)
                    .at[:, :B, :].set(jnp.broadcast_to(toks[:, :, None], (T, B, _LANE))))

        y_pad, h_pad = _decode_pallas(cfg, params, toks_pad, h0_pad)

        logits = jnp.transpose(y_pad[:, :B, :V], (1, 0, 2))        # (B, T, V)
        return {'logits': logits,
                'predictions': jnp.argmax(logits, axis=-1),
                'decoder_hiddens': h_pad[:, :B, :H]}               # (T, B, H)

    return run(params, dec_input['x'], dec_input['target'],
               dec_input['encoder_last_state'])


# ---------------------------------- main -------------------------------------

if __name__ == "__main__":
    hparams = dict(dec_vocab_size=12, dec_embedding_size=16, dec_hidden_size=32,
                   dec_num_layers=2, dec_max_gen_length=10, dec_EOS_idx=0)
    B, S, T = 2, 8, 8
    H = hparams['dec_hidden_size']
    L = hparams['dec_num_layers']
    V = hparams['dec_vocab_size']

    key = jax.random.PRNGKey(0)
    pkey, k1, k2, k3, k4 = jax.random.split(key, 5)
    params = init_params(pkey, hparams)

    dec_input = {
        'encoder_output': jax.random.normal(k1, (B, S, H), jnp.float32),
        'encoder_last_state': jax.random.normal(k2, (B, L, H), jnp.float32),
        'target': jax.random.randint(k3, (B, T), 0, V),
        'x': jax.random.randint(k4, (B, 1), 0, V),
    }

    out = gru_decoder_forward(params, dec_input, tf_ratio=1.0, hparams=hparams)
    jax.block_until_ready(out['logits'])
    jax.block_until_ready(out['predictions'])
    jax.block_until_ready(out['decoder_hiddens'])
    assert out['logits'].shape == (B, T, V)
    assert out['predictions'].shape == (B, T)
    assert out['decoder_hiddens'].shape == (T, B, H)

    # Also exercise the greedy (non teacher-forcing) path once.
    out2 = gru_decoder_forward(params, dec_input, tf_ratio=0.0, hparams=hparams)
    jax.block_until_ready(out2['logits'])
    assert out2['logits'].shape == (B, hparams['dec_max_gen_length'], V)
    print("KERNEL_OK")
</pallas_src>

<mosaic_0001>
module attributes {stable_mosaic.version = 11 : i64} {
  func.func @kernel(%arg0: i32, %arg1: memref<1x8x128xi32, #tpu.memory_space<vmem>>, %arg2: memref<2x8x128xf32, #tpu.memory_space<vmem>>, %arg3: memref<128x128xf32, #tpu.memory_space<vmem>>, %arg4: memref<256x512xf32, #tpu.memory_space<vmem>>, %arg5: memref<1x512xf32, #tpu.memory_space<vmem>>, %arg6: memref<256x512xf32, #tpu.memory_space<vmem>>, %arg7: memref<1x512xf32, #tpu.memory_space<vmem>>, %arg8: memref<128x128xf32, #tpu.memory_space<vmem>>, %arg9: memref<1x128xf32, #tpu.memory_space<vmem>>, %arg10: memref<1x8x128xf32, #tpu.memory_space<vmem>>, %arg11: memref<1x8x128xf32, #tpu.memory_space<vmem>>, %arg12: memref<2x8x128xf32, #tpu.memory_space<vmem>>, %arg13: memref<8x128xf32, #tpu.memory_space<vmem>>, %arg14: memref<8x128xi32, #tpu.memory_space<vmem>>) attributes {dimension_semantics = [#tpu.dimension_semantics<arbitrary>], iteration_bounds = array<i64: 8>, scalar_prefetch = 0 : i64, scratch_operands = 3 : i64, tpu.core_type = #tpu.core_type<tc>, window_params = [{transform_indices = @transform_0, window_bounds = array<i64: 1, 8, 128>}, {pipeline_mode = #tpu.pipeline_mode<synchronous>, transform_indices = @transform_1, window_bounds = array<i64: 2, 8, 128>}, {pipeline_mode = #tpu.pipeline_mode<synchronous>, transform_indices = @transform_2, window_bounds = array<i64: 128, 128>}, {pipeline_mode = #tpu.pipeline_mode<synchronous>, transform_indices = @transform_3, window_bounds = array<i64: 256, 512>}, {pipeline_mode = #tpu.pipeline_mode<synchronous>, transform_indices = @transform_4, window_bounds = array<i64: 1, 512>}, {pipeline_mode = #tpu.pipeline_mode<synchronous>, transform_indices = @transform_5, window_bounds = array<i64: 256, 512>}, {pipeline_mode = #tpu.pipeline_mode<synchronous>, transform_indices = @transform_6, window_bounds = array<i64: 1, 512>}, {pipeline_mode = #tpu.pipeline_mode<synchronous>, transform_indices = @transform_7, window_bounds = array<i64: 128, 128>}, {pipeline_mode = #tpu.pipeline_mode<synchronous>, transform_indices = @transform_8, window_bounds = array<i64: 1, 128>}, {transform_indices = @transform_9, window_bounds = array<i64: 1, 8, 128>}, {transform_indices = @transform_10, window_bounds = array<i64: 1, 8, 128>}]} {
    %c0_i32 = arith.constant 0 : i32
    %0 = arith.cmpi eq, %arg0, %c0_i32 : i32
    %1 = arith.extui %0 : i1 to i32
    %c0_i32_0 = arith.constant 0 : i32
    %2 = arith.cmpi ne, %1, %c0_i32_0 : i32
    scf.if %2 {
      %c0_65 = arith.constant 0 : index
      %c0_66 = arith.constant 0 : index
      %c0_67 = arith.constant 0 : index
      %132 = vector.load %arg2[%c0_65, %c0_66, %c0_67] : memref<2x8x128xf32, #tpu.memory_space<vmem>>, vector<2x8x128xf32>
      %c0_68 = arith.constant 0 : index
      %c0_69 = arith.constant 0 : index
      %c0_70 = arith.constant 0 : index
      %133 = vector.load %arg12[%c0_68, %c0_69, %c0_70] : memref<2x8x128xf32, #tpu.memory_space<vmem>>, vector<2x8x128xf32>
      tpu.vector_store %arg12[%c0_68, %c0_69, %c0_70], %132 {strides = array<i32>} : memref<2x8x128xf32, #tpu.memory_space<vmem>>, vector<2x8x128xf32>,
      %134 = tpu.iota {dimensions = array<i32: 0>} : vector<8x128xi32>
      %c2_i32 = arith.constant 2 : i32
      %135 = vector.broadcast %c2_i32 : i32 to vector<8x128xi32>
      %136 = arith.cmpi slt, %134, %135 : vector<8x128xi32>
      %cst_71 = arith.constant 0.000000e+00 : f32
      %cst_72 = arith.constant 1.000000e+00 : f32
      %137 = vector.broadcast %cst_71 : f32 to vector<8x128xf32>
      %138 = vector.broadcast %cst_72 : f32 to vector<8x128xf32>
      %139 = arith.select %136, %137, %138 : vector<8x128xi1>, vector<8x128xf32>
      %c0_73 = arith.constant 0 : index
      %c0_74 = arith.constant 0 : index
      %140 = vector.load %arg13[%c0_73, %c0_74] : memref<8x128xf32, #tpu.memory_space<vmem>>, vector<8x128xf32>
      tpu.vector_store %arg13[%c0_73, %c0_74], %139 {strides = array<i32>} : memref<8x128xf32, #tpu.memory_space<vmem>>, vector<8x128xf32>,
      %c0_75 = arith.constant 0 : index
      %c0_76 = arith.constant 0 : index
      %c0_77 = arith.constant 0 : index
      %141 = vector.load %arg1[%c0_75, %c0_76, %c0_77] : memref<1x8x128xi32, #tpu.memory_space<vmem>>, vector<1x8x128xi32>
      %142 = vector.shape_cast %141 : vector<1x8x128xi32> to vector<8x128xi32>
      %c0_78 = arith.constant 0 : index
      %c0_79 = arith.constant 0 : index
      %143 = vector.load %arg14[%c0_78, %c0_79] : memref<8x128xi32, #tpu.memory_space<vmem>>, vector<8x128xi32>
      tpu.vector_store %arg14[%c0_78, %c0_79], %142 {strides = array<i32>} : memref<8x128xi32, #tpu.memory_space<vmem>>, vector<8x128xi32>,
    } else {
    }
    %c0 = arith.constant 0 : index
    %c0_1 = arith.constant 0 : index
    %3 = vector.load %arg13[%c0, %c0_1] : memref<8x128xf32, #tpu.memory_space<vmem>>, vector<8x128xf32>
    %cst = arith.constant dense<0x7F800000> : vector<128xf32>
    %4 = vector.multi_reduction <minimumf>, %3, %cst [0] : vector<8x128xf32> to vector<128xf32>
    %5 = vector.shape_cast %4 : vector<128xf32> to vector<1x128xf32>
    %6 = vector.shape_cast %5 : vector<1x128xf32> to vector<1x128xf32>
    %7 = vector.broadcast %6 : vector<1x128xf32> to vector<8x128xf32>
    %8 = vector.extract_strided_slice %7 {offsets = [0, 0], sizes = [8, 1], strides = [1, 1]} : vector<8x128xf32> to vector<8x1xf32>
    %cst_2 = arith.constant 5.000000e-01 : f32
    %9 = vector.broadcast %cst_2 : f32 to vector<8x1xf32>
    %10 = arith.cmpf olt, %8, %9 : vector<8x1xf32>
    %c0_3 = arith.constant 0 : index
    %c0_4 = arith.constant 0 : index
    %c0_5 = arith.constant 0 : index
    %11 = vector.load %arg1[%c0_3, %c0_4, %c0_5] : memref<1x8x128xi32, #tpu.memory_space<vmem>>, vector<1x8x128xi32>
    %12 = vector.shape_cast %11 : vector<1x8x128xi32> to vector<8x128xi32>
    %13 = vector.extract_strided_slice %12 {offsets = [0, 0], sizes = [8, 1], strides = [1, 1]} : vector<8x128xi32> to vector<8x1xi32>
    %14 = tpu.iota {dimensions = array<i32: 1>} : vector<8x128xi32>
    %15 = vector.broadcast %13 : vector<8x1xi32> to vector<8x128xi32>
    %16 = arith.cmpi eq, %14, %15 : vector<8x128xi32>
    %17 = arith.extui %16 : vector<8x128xi1> to vector<8x128xi32>
    %18 = arith.sitofp %17 : vector<8x128xi32> to vector<8x128xf32>
    %c0_6 = arith.constant 0 : index
    %c0_7 = arith.constant 0 : index
    %19 = vector.load %arg3[%c0_6, %c0_7] : memref<128x128xf32, #tpu.memory_space<vmem>>, vector<128x128xf32>
    %cst_8 = arith.constant dense<0.000000e+00> : vector<8x128xf32>
    %20 = tpu.matmul %18, %19, %cst_8 {dimension_numbers = #tpu.dot_dimension_numbers<[1], [0], [0], [1], [0, 0, 1, 1], [], []>} : vector<8x128xf32>, vector<128x128xf32>, vector<8x128xf32> -> vector<8x128xf32>
    %cst_9 = arith.constant 0.000000e+00 : f32
    %21 = vector.broadcast %cst_9 : f32 to vector<8x128xf32>
    %22 = arith.maximumf %20, %21 : vector<8x128xf32>
    %c0_10 = arith.constant 0 : index
    %c0_11 = arith.constant 0 : index
    %c0_12 = arith.constant 0 : index
    %23 = vector.load %arg12[%c0_10, %c0_11, %c0_12] : memref<2x8x128xf32, #tpu.memory_space<vmem>>, vector<1x8x128xf32>
    %24 = vector.shape_cast %23 : vector<1x8x128xf32> to vector<8x128xf32>
    %c0_13 = arith.constant 0 : index
    %c0_14 = arith.constant 0 : index
    %25 = vector.load %arg4[%c0_13, %c0_14] : memref<256x512xf32, #tpu.memory_space<vmem>>, vector<128x512xf32>
    %cst_15 = arith.constant dense<0.000000e+00> : vector<8x512xf32>
    %26 = tpu.matmul %22, %25, %cst_15 {dimension_numbers = #tpu.dot_dimension_numbers<[1], [0], [0], [1], [0, 0, 1, 1], [], []>} : vector<8x128xf32>, vector<128x512xf32>, vector<8x512xf32> -> vector<8x512xf32>
    %c128 = arith.constant 128 : index
    %c0_16 = arith.constant 0 : index
    %27 = vector.load %arg4[%c128, %c0_16] : memref<256x512xf32, #tpu.memory_space<vmem>>, vector<128x512xf32>
    %cst_17 = arith.constant dense<0.000000e+00> : vector<8x512xf32>
    %28 = tpu.matmul %24, %27, %cst_17 {dimension_numbers = #tpu.dot_dimension_numbers<[1], [0], [0], [1], [0, 0, 1, 1], [], []>} : vector<8x128xf32>, vector<128x512xf32>, vector<8x512xf32> -> vector<8x512xf32>
    %29 = arith.addf %26, %28 : vector<8x512xf32>
    %c0_18 = arith.constant 0 : index
    %c0_19 = arith.constant 0 : index
    %30 = vector.load %arg5[%c0_18, %c0_19] : memref<1x512xf32, #tpu.memory_space<vmem>>, vector<1x512xf32>
    %31 = vector.broadcast %30 : vector<1x512xf32> to vector<8x512xf32>
    %32 = arith.addf %29, %31 : vector<8x512xf32>
    %33 = vector.extract_strided_slice %32 {offsets = [0, 0], sizes = [8, 128], strides = [1, 1]} : vector<8x512xf32> to vector<8x128xf32>
    %34 = arith.negf %33 : vector<8x128xf32>
    %35 = math.exp %34 : vector<8x128xf32>
    %cst_20 = arith.constant 1.000000e+00 : f32
    %36 = vector.broadcast %cst_20 : f32 to vector<8x128xf32>
    %37 = arith.addf %36, %35 : vector<8x128xf32>
    %38 = arith.divf %36, %37 : vector<8x128xf32>
    %39 = vector.extract_strided_slice %32 {offsets = [0, 128], sizes = [8, 128], strides = [1, 1]} : vector<8x512xf32> to vector<8x128xf32>
    %40 = arith.negf %39 : vector<8x128xf32>
    %41 = math.exp %40 : vector<8x128xf32>
    %cst_21 = arith.constant 1.000000e+00 : f32
    %42 = vector.broadcast %cst_21 : f32 to vector<8x128xf32>
    %43 = arith.addf %42, %41 : vector<8x128xf32>
    %44 = arith.divf %42, %43 : vector<8x128xf32>
    %45 = vector.extract_strided_slice %32 {offsets = [0, 256], sizes = [8, 128], strides = [1, 1]} : vector<8x512xf32> to vector<8x128xf32>
    %46 = vector.extract_strided_slice %32 {offsets = [0, 384], sizes = [8, 128], strides = [1, 1]} : vector<8x512xf32> to vector<8x128xf32>
    %47 = arith.mulf %38, %46 : vector<8x128xf32>
    %48 = arith.addf %45, %47 : vector<8x128xf32>
    %49 = math.tanh %48 : vector<8x128xf32>
    %cst_22 = arith.constant 1.000000e+00 : f32
    %50 = vector.broadcast %cst_22 : f32 to vector<8x128xf32>
    %51 = arith.subf %50, %44 : vector<8x128xf32>
    %52 = arith.mulf %51, %49 : vector<8x128xf32>
    %53 = arith.mulf %44, %24 : vector<8x128xf32>
    %54 = arith.addf %52, %53 : vector<8x128xf32>
    %c0_23 = arith.constant 0 : index
    %c0_24 = arith.constant 0 : index
    %c0_25 = arith.constant 0 : index
    %55 = vector.load %arg12[%c0_23, %c0_24, %c0_25] : memref<2x8x128xf32, #tpu.memory_space<vmem>>, vector<1x8x128xf32>
    %56 = vector.shape_cast %55 : vector<1x8x128xf32> to vector<8x128xf32>
    %57 = vector.shape_cast %54 : vector<8x128xf32> to vector<1x8x128xf32>
    tpu.vector_store %arg12[%c0_23, %c0_24, %c0_25], %57 {strides = array<i32>} : memref<2x8x128xf32, #tpu.memory_space<vmem>>, vector<1x8x128xf32>,
    %c1 = arith.constant 1 : index
    %c0_26 = arith.constant 0 : index
    %c0_27 = arith.constant 0 : index
    %58 = vector.load %arg12[%c1, %c0_26, %c0_27] : memref<2x8x128xf32, #tpu.memory_space<vmem>>, vector<1x8x128xf32>
    %59 = vector.shape_cast %58 : vector<1x8x128xf32> to vector<8x128xf32>
    %c0_28 = arith.constant 0 : index
    %c0_29 = arith.constant 0 : index
    %60 = vector.load %arg6[%c0_28, %c0_29] : memref<256x512xf32, #tpu.memory_space<vmem>>, vector<128x512xf32>
    %cst_30 = arith.constant dense<0.000000e+00> : vector<8x512xf32>
    %61 = tpu.matmul %54, %60, %cst_30 {dimension_numbers = #tpu.dot_dimension_numbers<[1], [0], [0], [1], [0, 0, 1, 1], [], []>} : vector<8x128xf32>, vector<128x512xf32>, vector<8x512xf32> -> vector<8x512xf32>
    %c128_31 = arith.constant 128 : index
    %c0_32 = arith.constant 0 : index
    %62 = vector.load %arg6[%c128_31, %c0_32] : memref<256x512xf32, #tpu.memory_space<vmem>>, vector<128x512xf32>
    %cst_33 = arith.constant dense<0.000000e+00> : vector<8x512xf32>
    %63 = tpu.matmul %59, %62, %cst_33 {dimension_numbers = #tpu.dot_dimension_numbers<[1], [0], [0], [1], [0, 0, 1, 1], [], []>} : vector<8x128xf32>, vector<128x512xf32>, vector<8x512xf32> -> vector<8x512xf32>
    %64 = arith.addf %61, %63 : vector<8x512xf32>
    %c0_34 = arith.constant 0 : index
    %c0_35 = arith.constant 0 : index
    %65 = vector.load %arg7[%c0_34, %c0_35] : memref<1x512xf32, #tpu.memory_space<vmem>>, vector<1x512xf32>
    %66 = vector.broadcast %65 : vector<1x512xf32> to vector<8x512xf32>
    %67 = arith.addf %64, %66 : vector<8x512xf32>
    %68 = vector.extract_strided_slice %67 {offsets = [0, 0], sizes = [8, 128], strides = [1, 1]} : vector<8x512xf32> to vector<8x128xf32>
    %69 = arith.negf %68 : vector<8x128xf32>
    %70 = math.exp %69 : vector<8x128xf32>
    %cst_36 = arith.constant 1.000000e+00 : f32
    %71 = vector.broadcast %cst_36 : f32 to vector<8x128xf32>
    %72 = arith.addf %71, %70 : vector<8x128xf32>
    %73 = arith.divf %71, %72 : vector<8x128xf32>
    %74 = vector.extract_strided_slice %67 {offsets = [0, 128], sizes = [8, 128], strides = [1, 1]} : vector<8x512xf32> to vector<8x128xf32>
    %75 = arith.negf %74 : vector<8x128xf32>
    %76 = math.exp %75 : vector<8x128xf32>
    %cst_37 = arith.constant 1.000000e+00 : f32
    %77 = vector.broadcast %cst_37 : f32 to vector<8x128xf32>
    %78 = arith.addf %77, %76 : vector<8x128xf32>
    %79 = arith.divf %77, %78 : vector<8x128xf32>
    %80 = vector.extract_strided_slice %67 {offsets = [0, 256], sizes = [8, 128], strides = [1, 1]} : vector<8x512xf32> to vector<8x128xf32>
    %81 = vector.extract_strided_slice %67 {offsets = [0, 384], sizes = [8, 128], strides = [1, 1]} : vector<8x512xf32> to vector<8x128xf32>
    %82 = arith.mulf %73, %81 : vector<8x128xf32>
    %83 = arith.addf %80, %82 : vector<8x128xf32>
    %84 = math.tanh %83 : vector<8x128xf32>
    %cst_38 = arith.constant 1.000000e+00 : f32
    %85 = vector.broadcast %cst_38 : f32 to vector<8x128xf32>
    %86 = arith.subf %85, %79 : vector<8x128xf32>
    %87 = arith.mulf %86, %84 : vector<8x128xf32>
    %88 = arith.mulf %79, %59 : vector<8x128xf32>
    %89 = arith.addf %87, %88 : vector<8x128xf32>
    %c1_39 = arith.constant 1 : index
    %c0_40 = arith.constant 0 : index
    %c0_41 = arith.constant 0 : index
    %90 = vector.load %arg12[%c1_39, %c0_40, %c0_41] : memref<2x8x128xf32, #tpu.memory_space<vmem>>, vector<1x8x128xf32>
    %91 = vector.shape_cast %90 : vector<1x8x128xf32> to vector<8x128xf32>
    %92 = vector.shape_cast %89 : vector<8x128xf32> to vector<1x8x128xf32>
    tpu.vector_store %arg12[%c1_39, %c0_40, %c0_41], %92 {strides = array<i32>} : memref<2x8x128xf32, #tpu.memory_space<vmem>>, vector<1x8x128xf32>,
    %c0_42 = arith.constant 0 : index
    %c0_43 = arith.constant 0 : index
    %93 = vector.load %arg8[%c0_42, %c0_43] : memref<128x128xf32, #tpu.memory_space<vmem>>, vector<128x128xf32>
    %cst_44 = arith.constant dense<0.000000e+00> : vector<8x128xf32>
    %94 = tpu.matmul %89, %93, %cst_44 {dimension_numbers = #tpu.dot_dimension_numbers<[1], [0], [0], [1], [0, 0, 1, 1], [], []>} : vector<8x128xf32>, vector<128x128xf32>, vector<8x128xf32> -> vector<8x128xf32>
    %c0_45 = arith.constant 0 : index
    %c0_46 = arith.constant 0 : index
    %95 = vector.load %arg9[%c0_45, %c0_46] : memref<1x128xf32, #tpu.memory_space<vmem>>, vector<1x128xf32>
    %96 = vector.broadcast %95 : vector<1x128xf32> to vector<8x128xf32>
    %97 = arith.addf %94, %96 : vector<8x128xf32>
    %cst_47 = arith.constant 0.000000e+00 : f32
    %98 = vector.shape_cast %10 : vector<8x1xi1> to vector<8x1xi1>
    %99 = vector.broadcast %98 : vector<8x1xi1> to vector<8x128xi1>
    %100 = vector.broadcast %cst_47 : f32 to vector<8x128xf32>
    %101 = arith.select %99, %97, %100 : vector<8x128xi1>, vector<8x128xf32>
    %c0_48 = arith.constant 0 : index
    %c0_49 = arith.constant 0 : index
    %c0_50 = arith.constant 0 : index
    %102 = vector.load %arg10[%c0_48, %c0_49, %c0_50] : memref<1x8x128xf32, #tpu.memory_space<vmem>>, vector<1x8x128xf32>
    %103 = vector.shape_cast %102 : vector<1x8x128xf32> to vector<8x128xf32>
    %104 = vector.shape_cast %101 : vector<8x128xf32> to vector<1x8x128xf32>
    tpu.vector_store %arg10[%c0_48, %c0_49, %c0_50], %104 {strides = array<i32>} : memref<1x8x128xf32, #tpu.memory_space<vmem>>, vector<1x8x128xf32>,
    %cst_51 = arith.constant 0.000000e+00 : f32
    %105 = vector.shape_cast %10 : vector<8x1xi1> to vector<8x1xi1>
    %106 = vector.broadcast %105 : vector<8x1xi1> to vector<8x128xi1>
    %107 = vector.broadcast %cst_51 : f32 to vector<8x128xf32>
    %108 = arith.select %106, %89, %107 : vector<8x128xi1>, vector<8x128xf32>
    %c0_52 = arith.constant 0 : index
    %c0_53 = arith.constant 0 : index
    %c0_54 = arith.constant 0 : index
    %109 = vector.load %arg11[%c0_52, %c0_53, %c0_54] : memref<1x8x128xf32, #tpu.memory_space<vmem>>, vector<1x8x128xf32>
    %110 = vector.shape_cast %109 : vector<1x8x128xf32> to vector<8x128xf32>
    %111 = vector.shape_cast %108 : vector<8x128xf32> to vector<1x8x128xf32>
    tpu.vector_store %arg11[%c0_52, %c0_53, %c0_54], %111 {strides = array<i32>} : memref<1x8x128xf32, #tpu.memory_space<vmem>>, vector<1x8x128xf32>,
    %cst_55 = arith.constant dense<0xFF800000> : vector<8xf32>
    %112 = vector.multi_reduction <maximumf>, %97, %cst_55 [1] : vector<8x128xf32> to vector<8xf32>
    %113 = vector.shape_cast %112 : vector<8xf32> to vector<8x1xf32>
    %114 = tpu.iota {dimensions = array<i32: 1>} : vector<8x128xi32>
    %115 = arith.sitofp %114 : vector<8x128xi32> to vector<8x128xf32>
    %116 = vector.broadcast %113 : vector<8x1xf32> to vector<8x128xf32>
    %117 = arith.cmpf oeq, %97, %116 : vector<8x128xf32>
    %cst_56 = arith.constant 1.280000e+02 : f32
    %118 = vector.broadcast %cst_56 : f32 to vector<8x128xf32>
    %119 = arith.select %117, %115, %118 : vector<8x128xi1>, vector<8x128xf32>
    %cst_57 = arith.constant dense<0x7F800000> : vector<8xf32>
    %120 = vector.multi_reduction <minimumf>, %119, %cst_57 [1] : vector<8x128xf32> to vector<8xf32>
    %121 = vector.shape_cast %120 : vector<8xf32> to vector<8x1xf32>
    %122 = arith.fptosi %121 : vector<8x1xf32> to vector<8x1xi32>
    %c0_58 = arith.constant 0 : index
    %c0_59 = arith.constant 0 : index
    %123 = vector.load %arg13[%c0_58, %c0_59] : memref<8x128xf32, #tpu.memory_space<vmem>>, vector<8x128xf32>
    %c0_i32_60 = arith.constant 0 : i32
    %124 = vector.broadcast %c0_i32_60 : i32 to vector<8x1xi32>
    %125 = arith.cmpi eq, %122, %124 : vector<8x1xi32>
    %cst_61 = arith.constant 1.000000e+00 : f32
    %cst_62 = arith.constant 0.000000e+00 : f32
    %126 = vector.broadcast %cst_61 : f32 to vector<8x1xf32>
    %127 = vector.broadcast %cst_62 : f32 to vector<8x1xf32>
    %128 = arith.select %125, %126, %127 : vector<8x1xi1>, vector<8x1xf32>
    %129 = vector.broadcast %128 : vector<8x1xf32> to vector<8x128xf32>
    %130 = arith.maximumf %123, %129 : vector<8x128xf32>
    %c0_63 = arith.constant 0 : index
    %c0_64 = arith.constant 0 : index
    %131 = vector.load %arg13[%c0_63, %c0_64] : memref<8x128xf32, #tpu.memory_space<vmem>>, vector<8x128xf32>
    tpu.vector_store %arg13[%c0_63, %c0_64], %130 {strides = array<i32>} : memref<8x128xf32, #tpu.memory_space<vmem>>, vector<8x128xf32>,
    return
  }
  func.func @transform_0(%arg0: i32) -> (i32, i32, i32) {
    %c0_i32 = arith.constant 0 : i32
    %c0_i32_0 = arith.constant 0 : i32
    %c0_i32_1 = arith.constant 0 : i32
    return %arg0, %c0_i32, %c0_i32_0 : i32, i32, i32
  }
  func.func @transform_1(%arg0: i32) -> (i32, i32, i32) {
    %c0_i32 = arith.constant 0 : i32
    %c0_i32_0 = arith.constant 0 : i32
    %c0_i32_1 = arith.constant 0 : i32
    %c0_i32_2 = arith.constant 0 : i32
    return %c0_i32, %c0_i32_0, %c0_i32_1 : i32, i32, i32
  }
  func.func @transform_2(%arg0: i32) -> (i32, i32) {
    %c0_i32 = arith.constant 0 : i32
    %c0_i32_0 = arith.constant 0 : i32
    %c0_i32_1 = arith.constant 0 : i32
    return %c0_i32, %c0_i32_0 : i32, i32
  }
  func.func @transform_3(%arg0: i32) -> (i32, i32) {
    %c0_i32 = arith.constant 0 : i32
    %c0_i32_0 = arith.constant 0 : i32
    %c0_i32_1 = arith.constant 0 : i32
    return %c0_i32, %c0_i32_0 : i32, i32
  }
  func.func @transform_4(%arg0: i32) -> (i32, i32) {
    %c0_i32 = arith.constant 0 : i32
    %c0_i32_0 = arith.constant 0 : i32
    %c0_i32_1 = arith.constant 0 : i32
    return %c0_i32, %c0_i32_0 : i32, i32
  }
  func.func @transform_5(%arg0: i32) -> (i32, i32) {
    %c0_i32 = arith.constant 0 : i32
    %c0_i32_0 = arith.constant 0 : i32
    %c0_i32_1 = arith.constant 0 : i32
    return %c0_i32, %c0_i32_0 : i32, i32
  }
  func.func @transform_6(%arg0: i32) -> (i32, i32) {
    %c0_i32 = arith.constant 0 : i32
    %c0_i32_0 = arith.constant 0 : i32
    %c0_i32_1 = arith.constant 0 : i32
    return %c0_i32, %c0_i32_0 : i32, i32
  }
  func.func @transform_7(%arg0: i32) -> (i32, i32) {
    %c0_i32 = arith.constant 0 : i32
    %c0_i32_0 = arith.constant 0 : i32
    %c0_i32_1 = arith.constant 0 : i32
    return %c0_i32, %c0_i32_0 : i32, i32
  }
  func.func @transform_8(%arg0: i32) -> (i32, i32) {
    %c0_i32 = arith.constant 0 : i32
    %c0_i32_0 = arith.constant 0 : i32
    %c0_i32_1 = arith.constant 0 : i32
    return %c0_i32, %c0_i32_0 : i32, i32
  }
  func.func @transform_9(%arg0: i32) -> (i32, i32, i32) {
    %c0_i32 = arith.constant 0 : i32
    %c0_i32_0 = arith.constant 0 : i32
    %c0_i32_1 = arith.constant 0 : i32
    return %arg0, %c0_i32, %c0_i32_0 : i32, i32, i32
  }
  func.func @transform_10(%arg0: i32) -> (i32, i32, i32) {
    %c0_i32 = arith.constant 0 : i32
    %c0_i32_0 = arith.constant 0 : i32
    %c0_i32_1 = arith.constant 0 : i32
    return %arg0, %c0_i32, %c0_i32_0 : i32, i32, i32
  }
}

</mosaic_0001>

<llo_original>
// kernel: run.1
$region0: #{run.1}
  #allocation0 [shape = 'u32[]', space=smem, size = 0x4, offset = 0x4, fixed_abs, tag = 'smem constant byte address 0x4 - core index']
  #allocation1 [shape = 'u32[144,128]{1,0:T(1,128)}', space=vmem, size = 0x12000, scoped, tag = 'internal scratch']
  #allocation2 [shape = 'f32[2,8,128]{2,1,0:T(8,128)}', space=vmem, size = 0x2000, scoped, tag = 'scratch operand']
  #allocation3 [shape = 'f32[8,128]{1,0:T(8,128)}', space=vmem, size = 0x1000, scoped, tag = 'scratch operand']
  #allocation4 [shape = 's32[8,128]{1,0:T(8,128)}', space=vmem, size = 0x1000, scoped, tag = 'scratch operand']
  %s0 = inlined_call_operand.vmem [shape: s32[8,8,128], index: 0, kind: input, shape index: {}]
  %s1 = inlined_call_operand.vmem [shape: f32[2,8,128], index: 1, kind: input, shape index: {}]
  %s2 = inlined_call_operand.vmem [shape: f32[128,128], index: 2, kind: input, shape index: {}]
  %s3 = inlined_call_operand.hbm [shape: f32[256,512], index: 3, kind: input, shape index: {}]
  %s4 = inlined_call_operand.vmem [shape: f32[1,512], index: 4, kind: input, shape index: {}]
  %s5 = inlined_call_operand.hbm [shape: f32[256,512], index: 5, kind: input, shape index: {}]
  %s6 = inlined_call_operand.vmem [shape: f32[1,512], index: 6, kind: input, shape index: {}]
  %s7 = inlined_call_operand.hbm [shape: f32[128,128], index: 7, kind: input, shape index: {}]
  %s8 = inlined_call_operand.vmem [shape: f32[1,128], index: 8, kind: input, shape index: {}]
  %s9 = inlined_call_operand.vmem [shape: f32[8,8,128], index: 9, kind: output, shape index: {0}]
  %s10 = inlined_call_operand.vmem [shape: f32[8,8,128], index: 10, kind: output, shape index: {1}]
  %11 = xla_tuple %s9, %s10
  %s12 = sld [smem:[#allocation0]]
  $region93: #{run.1} parent=0
    _
  %s14 = ssub.s32 1, %s12
  %s15 = scalar_select 0, %s14, %s12
  $region1: #{run.1} parent=0
    #allocation5 [shape = 'u8[524288]{0}', space=vmem, size = 0x80000, scoped, tag = 'input window, operand 3, single buffered']
    #allocation6 [shape = 's32[2]{0}', space=sflag, size = 0x8, scoped, tag = 'scoped memory for run.1']
    #allocation7 [shape = 'u8[524288]{0}', space=vmem, size = 0x80000, scoped, tag = 'input window, operand 5, single buffered']
    #allocation8 [shape = 's32[1]{0}', space=sflag, size = 0x4, scoped, tag = 'scoped memory for run.1']
    #allocation9 [shape = 'u8[65536]{0}', space=vmem, size = 0x10000, scoped, tag = 'input window, operand 7, single buffered']
    %16 = vsyncpa [#allocation6], 0
    %17 = vsyncpa [#allocation8], 0
    loop: start=0, step=1, limit=10
    $region2: #{run.1} parent=1 // loop_pre_header
      _
    $region3: #{run.1} parent=1 // loop_header
      %s19 = sphi 0, %s23
      %p20 = scmp.ge.s32.totalorder %s19, 10
      %s29 = sphi 0, %s31
      %s32 = sphi 0, %s29
      %s33 = sphi 0, %s32
      %s49 = sphi 0, %s33
      %s53 = sphi 0, %s53
      %s55 = sphi 0, %s53
      %s56 = sphi 0, %s55
      %s70 = sphi 0, %s56
      %s74 = sphi 0, %s74
      %s76 = sphi 0, %s74
      %s77 = sphi 0, %s76
      %s91 = sphi 0, %s77
      %s95 = sphi 0, %s95
      %s97 = sphi 0, %s95
      %s98 = sphi 0, %s97
      %s112 = sphi 0, %s98
      %s116 = sphi 0, %s116
      %s118 = sphi 0, %s116
      %s119 = sphi 0, %s118
      %s133 = sphi 0, %s119
      %s137 = sphi 0, %s137
      %s139 = sphi 0, %s137
      %s140 = sphi 0, %s139
      %s154 = sphi 0, %s140
      %s158 = sphi 0, %s158
      %s160 = sphi 0, %s158
      %s161 = sphi 0, %s160
      %s175 = sphi 0, %s161
      %s179 = sphi 0, %s179
      %s181 = sphi 0, %s179
      %s182 = sphi 0, %s181
      %s196 = sphi 0, %s182
      %s200 = sphi 0, %s200
      %s202 = sphi 0, %s200
      %s203 = sphi 0, %s202
      %s217 = sphi 0, %s203
      %s223 = sphi 0, %s225
      %s226 = sphi 0, %s223
      %s227 = sphi 0, %s226
      %s243 = sphi 0, %s227
      %s249 = sphi 0, %s251
      %s252 = sphi 0, %s249
      %s253 = sphi 0, %s252
      %s269 = sphi 0, %s253
    $region4: #{run.1} parent=1 // loop_header_branch
      %22 = sbr.rel (%p20) target = $region8
    $region5: #{run.1} parent=1 // loop_body
      %s24 = ssub.s32 %s19, 1
      %s25 = ssub.s32 %s19, 2
      %s26 = sadd.s32 %s19, 1
      %s27 = ssub.s32 %s19, %s26
      %p28 = scmp.eq.s32.totalorder %s27, 0
      %s30 = sadd.s32 %s29, 1
      %s31 = scalar_select %p28, %s29, %s30
      %p34 = pneg %p28
      %p35 = scmp.eq.s32.totalorder %s19, 7
      %p36 = por %p34, %p35
      %p37 = scmp.ne.s32.totalorder %s29, %s32
      %p38 = scmp.eq.s32.totalorder %s19, 0
      %p39 = por %p37, %p38
      %p40 = scmp.ne.s32.totalorder %s29, %s32
      %p41 = scmp.eq.s32.totalorder %s24, 7
      %p42 = por %p40, %p41
      %p43 = scmp.ne.s32.totalorder %s32, %s33
      %p44 = scmp.eq.s32.totalorder %s24, 0
      %p45 = por %p43, %p44
      %p46 = scmp.ne.s32.totalorder %s32, %s33
      %p47 = scmp.eq.s32.totalorder %s25, 7
      %p48 = por %p46, %p47
      %p50 = scmp.ne.s32.totalorder %s33, %s49
      %p51 = scmp.eq.s32.totalorder %s25, 0
      %p52 = por %p50, %p51
      %s54 = sadd.s32 %s53, 1
      %p57 = scmp.eq.s32.totalorder %s19, 7
      %p58 = scmp.ne.s32.totalorder %s53, %s55
      %p59 = scmp.eq.s32.totalorder %s19, 0
      %p60 = por %p58, %p59
      %p61 = scmp.ne.s32.totalorder %s53, %s55
      %p62 = scmp.eq.s32.totalorder %s24, 7
      %p63 = por %p61, %p62
      %p64 = scmp.ne.s32.totalorder %s55, %s56
      %p65 = scmp.eq.s32.totalorder %s24, 0
      %p66 = por %p64, %p65
      %p67 = scmp.ne.s32.totalorder %s55, %s56
      %p68 = scmp.eq.s32.totalorder %s25, 7
      %p69 = por %p67, %p68
      %p71 = scmp.ne.s32.totalorder %s56, %s70
      %p72 = scmp.eq.s32.totalorder %s25, 0
      %p73 = por %p71, %p72
      %s75 = sadd.s32 %s74, 1
      %p78 = scmp.eq.s32.totalorder %s19, 7
      %p79 = scmp.ne.s32.totalorder %s74, %s76
      %p80 = scmp.eq.s32.totalorder %s19, 0
      %p81 = por %p79, %p80
      %p82 = scmp.ne.s32.totalorder %s74, %s76
      %p83 = scmp.eq.s32.totalorder %s24, 7
      %p84 = por %p82, %p83
      %p85 = scmp.ne.s32.totalorder %s76, %s77
      %p86 = scmp.eq.s32.totalorder %s24, 0
      %p87 = por %p85, %p86
      %p88 = scmp.ne.s32.totalorder %s76, %s77
      %p89 = scmp.eq.s32.totalorder %s25, 7
      %p90 = por %p88, %p89
      %p92 = scmp.ne.s32.totalorder %s77, %s91
      %p93 = scmp.eq.s32.totalorder %s25, 0
      %p94 = por %p92, %p93
      %s96 = sadd.s32 %s95, 1
      %p99 = scmp.eq.s32.totalorder %s19, 7
      %p100 = scmp.ne.s32.totalorder %s95, %s97
      %p101 = scmp.eq.s32.totalorder %s19, 0
      %p102 = por %p100, %p101
      %p103 = scmp.ne.s32.totalorder %s95, %s97
      %p104 = scmp.eq.s32.totalorder %s24, 7
      %p105 = por %p103, %p104
      %p106 = scmp.ne.s32.totalorder %s97, %s98
      %p107 = scmp.eq.s32.totalorder %s24, 0
      %p108 = por %p106, %p107
      %p109 = scmp.ne.s32.totalorder %s97, %s98
      %p110 = scmp.eq.s32.totalorder %s25, 7
      %p111 = por %p109, %p110
      %p113 = scmp.ne.s32.totalorder %s98, %s112
      %p114 = scmp.eq.s32.totalorder %s25, 0
      %p115 = por %p113, %p114
      %s117 = sadd.s32 %s116, 1
      %p120 = scmp.eq.s32.totalorder %s19, 7
      %p121 = scmp.ne.s32.totalorder %s116, %s118
      %p122 = scmp.eq.s32.totalorder %s19, 0
      %p123 = por %p121, %p122
      %p124 = scmp.ne.s32.totalorder %s116, %s118
      %p125 = scmp.eq.s32.totalorder %s24, 7
      %p126 = por %p124, %p125
      %p127 = scmp.ne.s32.totalorder %s118, %s119
      %p128 = scmp.eq.s32.totalorder %s24, 0
      %p129 = por %p127, %p128
      %p130 = scmp.ne.s32.totalorder %s118, %s119
      %p131 = scmp.eq.s32.totalorder %s25, 7
      %p132 = por %p130, %p131
      %p134 = scmp.ne.s32.totalorder %s119, %s133
      %p135 = scmp.eq.s32.totalorder %s25, 0
      %p136 = por %p134, %p135
      %s138 = sadd.s32 %s137, 1
      %p141 = scmp.eq.s32.totalorder %s19, 7
      %p142 = scmp.ne.s32.totalorder %s137, %s139
      %p143 = scmp.eq.s32.totalorder %s19, 0
      %p144 = por %p142, %p143
      %p145 = scmp.ne.s32.totalorder %s137, %s139
      %p146 = scmp.eq.s32.totalorder %s24, 7
      %p147 = por %p145, %p146
      %p148 = scmp.ne.s32.totalorder %s139, %s140
      %p149 = scmp.eq.s32.totalorder %s24, 0
      %p150 = por %p148, %p149
      %p151 = scmp.ne.s32.totalorder %s139, %s140
      %p152 = scmp.eq.s32.totalorder %s25, 7
      %p153 = por %p151, %p152
      %p155 = scmp.ne.s32.totalorder %s140, %s154
      %p156 = scmp.eq.s32.totalorder %s25, 0
      %p157 = por %p155, %p156
      %s159 = sadd.s32 %s158, 1
      %p162 = scmp.eq.s32.totalorder %s19, 7
      %p163 = scmp.ne.s32.totalorder %s158, %s160
      %p164 = scmp.eq.s32.totalorder %s19, 0
      %p165 = por %p163, %p164
      %p166 = scmp.ne.s32.totalorder %s158, %s160
      %p167 = scmp.eq.s32.totalorder %s24, 7
      %p168 = por %p166, %p167
      %p169 = scmp.ne.s32.totalorder %s160, %s161
      %p170 = scmp.eq.s32.totalorder %s24, 0
      %p171 = por %p169, %p170
      %p172 = scmp.ne.s32.totalorder %s160, %s161
      %p173 = scmp.eq.s32.totalorder %s25, 7
      %p174 = por %p172, %p173
      %p176 = scmp.ne.s32.totalorder %s161, %s175
      %p177 = scmp.eq.s32.totalorder %s25, 0
      %p178 = por %p176, %p177
      %s180 = sadd.s32 %s179, 1
      %p183 = scmp.eq.s32.totalorder %s19, 7
      %p184 = scmp.ne.s32.totalorder %s179, %s181
      %p185 = scmp.eq.s32.totalorder %s19, 0
      %p186 = por %p184, %p185
      %p187 = scmp.ne.s32.totalorder %s179, %s181
      %p188 = scmp.eq.s32.totalorder %s24, 7
      %p189 = por %p187, %p188
      %p190 = scmp.ne.s32.totalorder %s181, %s182
      %p191 = scmp.eq.s32.totalorder %s24, 0
      %p192 = por %p190, %p191
      %p193 = scmp.ne.s32.totalorder %s181, %s182
      %p194 = scmp.eq.s32.totalorder %s25, 7
      %p195 = por %p193, %p194
      %p197 = scmp.ne.s32.totalorder %s182, %s196
      %p198 = scmp.eq.s32.totalorder %s25, 0
      %p199 = por %p197, %p198
      %s201 = sadd.s32 %s200, 1
      %p204 = scmp.eq.s32.totalorder %s19, 7
      %p205 = scmp.ne.s32.totalorder %s200, %s202
      %p206 = scmp.eq.s32.totalorder %s19, 0
      %p207 = por %p205, %p206
      %p208 = scmp.ne.s32.totalorder %s200, %s202
      %p209 = scmp.eq.s32.totalorder %s24, 7
      %p210 = por %p208, %p209
      %p211 = scmp.ne.s32.totalorder %s202, %s203
      %p212 = scmp.eq.s32.totalorder %s24, 0
      %p213 = por %p211, %p212
      %p214 = scmp.ne.s32.totalorder %s202, %s203
      %p215 = scmp.eq.s32.totalorder %s25, 7
      %p216 = por %p214, %p215
      %p218 = scmp.ne.s32.totalorder %s203, %s217
      %p219 = scmp.eq.s32.totalorder %s25, 0
      %p220 = por %p218, %p219
      %s221 = ssub.s32 %s19, %s26
      %p222 = scmp.eq.s32.totalorder %s221, 0
      %s224 = sadd.s32 %s223, 1
      %s225 = scalar_select %p222, %s223, %s224
      %p228 = pneg %p222
      %p229 = scmp.eq.s32.totalorder %s19, 7
      %p230 = por %p228, %p229
      %p231 = scmp.ne.s32.totalorder %s223, %s226
      %p232 = scmp.eq.s32.totalorder %s19, 0
      %p233 = por %p231, %p232
      %p234 = scmp.ne.s32.totalorder %s223, %s226
      %p235 = scmp.eq.s32.totalorder %s24, 7
      %p236 = por %p234, %p235
      %p237 = scmp.ne.s32.totalorder %s226, %s227
      %p238 = scmp.eq.s32.totalorder %s24, 0
      %p239 = por %p237, %p238
      %p240 = scmp.ne.s32.totalorder %s226, %s227
      %p241 = scmp.eq.s32.totalorder %s25, 7
      %p242 = por %p240, %p241
      %p244 = scmp.ne.s32.totalorder %s227, %s243
      %p245 = scmp.eq.s32.totalorder %s25, 0
      %p246 = por %p244, %p245
      %s247 = ssub.s32 %s19, %s26
      %p248 = scmp.eq.s32.totalorder %s247, 0
      %s250 = sadd.s32 %s249, 1
      %s251 = scalar_select %p248, %s249, %s250
      %p254 = pneg %p248
      %p255 = scmp.eq.s32.totalorder %s19, 7
      %p256 = por %p254, %p255
      %p257 = scmp.ne.s32.totalorder %s249, %s252
      %p258 = scmp.eq.s32.totalorder %s19, 0
      %p259 = por %p257, %p258
      %p260 = scmp.ne.s32.totalorder %s249, %s252
      %p261 = scmp.eq.s32.totalorder %s24, 7
      %p262 = por %p260, %p261
      %p263 = scmp.ne.s32.totalorder %s252, %s253
      %p264 = scmp.eq.s32.totalorder %s24, 0
      %p265 = por %p263, %p264
      %p266 = scmp.ne.s32.totalorder %s252, %s253
      %p267 = scmp.eq.s32.totalorder %s25, 7
      %p268 = por %p266, %p267
      %p270 = scmp.ne.s32.totalorder %s253, %s269
      %p271 = scmp.eq.s32.totalorder %s25, 0
      %p272 = por %p270, %p271
      %p273 = scmp.le.s32.totalorder 1, %s19
      %p274 = scmp.lt.s32.totalorder %s19, 9
      %p275 = pnand %p273, %p274
      %p276 = pneg %p275
      // Predicated region
      $region9: #{run.1} parent=5 // pred_check
        _
      $region10: #{run.1} parent=5 // pred_check_branch
        %278 = sbr.rel (%p275) target = $region12
      $region11: #{run.1} parent=5 // pred_region
        %s279 = ssub.s32 %s19, 1
        // Predicated region
        $region13: #{run.1} parent=11 // pred_check
          %p280 = pneg %p66
        $region14: #{run.1} parent=11 // pred_check_branch
          %282 = sbr.rel (%p280) target = $region16
        $region15: #{run.1} parent=11 // pred_region
          _
        $region16: #{run.1} parent=11 // pred_fallthru
          _
        // Predicated region
        $region17: #{run.1} parent=11 // pred_check
          %p283 = pneg %p87
        $region18: #{run.1} parent=11 // pred_check_branch
          %285 = sbr.rel (%p283) target = $region20
        $region19: #{run.1} parent=11 // pred_region
          _
        $region20: #{run.1} parent=11 // pred_fallthru
          _
        // Predicated region
        $region21: #{run.1} parent=11 // pred_check
          %p286 = pneg %p108
        $region22: #{run.1} parent=11 // pred_check_branch
          %288 = sbr.rel (%p286) target = $region24
        $region23: #{run.1} parent=11 // pred_region
          %s290 = ssub.s32 16384, 16384
          %291 = vsyncadd [#allocation6], %s290
          %s292 = sshll.u32 [#allocation5], 4
          %s293 = int_to_ptr.vmem [resolvable:$true] %s292
          %298 = dma.hbm_to_vmem [thread:$0]  %s3, 16384, %s293, [#allocation6], 512, 512, 32
        $region24: #{run.1} parent=11 // pred_fallthru
          _
        // Predicated region
        $region25: #{run.1} parent=11 // pred_check
          %p299 = pneg %p129
        $region26: #{run.1} parent=11 // pred_check_branch
          %301 = sbr.rel (%p299) target = $region28
        $region27: #{run.1} parent=11 // pred_region
          _
        $region28: #{run.1} parent=11 // pred_fallthru
          _
        // Predicated region
        $region29: #{run.1} parent=11 // pred_check
          %p302 = pneg %p150
        $region30: #{run.1} parent=11 // pred_check_branch
          %304 = sbr.rel (%p302) target = $region32
        $region31: #{run.1} parent=11 // pred_region
          %s306 = ssub.s32 16384, 16384
          %307 = vsyncadd [#allocation8], %s306
          %s308 = sshll.u32 [#allocation7], 4
          %s309 = int_to_ptr.vmem [resolvable:$true] %s308
          %314 = dma.hbm_to_vmem [thread:$0]  %s5, 16384, %s309, [#allocation8], 512, 512, 32
        $region32: #{run.1} parent=11 // pred_fallthru
          _
        // Predicated region
        $region33: #{run.1} parent=11 // pred_check
          %p315 = pneg %p171
        $region34: #{run.1} parent=11 // pred_check_branch
          %317 = sbr.rel (%p315) target = $region36
        $region35: #{run.1} parent=11 // pred_region
          _
        $region36: #{run.1} parent=11 // pred_fallthru
          _
        // Predicated region
        $region37: #{run.1} parent=11 // pred_check
          %p318 = pneg %p192
        $region38: #{run.1} parent=11 // pred_check_branch
          %320 = sbr.rel (%p318) target = $region40
        $region39: #{run.1} parent=11 // pred_region
          %s322 = ssub.s32 2048, 2048
          %323 = vsyncadd [#allocation8], %s322
          %s324 = sshll.u32 [#allocation9], 4
          %s325 = int_to_ptr.vmem [resolvable:$true] %s324
          %330 = dma.hbm_to_vmem [thread:$0]  %s7, 2048, %s325, [#allocation8], 128, 128, 8
        $region40: #{run.1} parent=11 // pred_fallthru
          _
        // Predicated region
        $region41: #{run.1} parent=11 // pred_check
          %p331 = pneg %p213
        $region42: #{run.1} parent=11 // pred_check_branch
          %333 = sbr.rel (%p331) target = $region44
        $region43: #{run.1} parent=11 // pred_region
          _
        $region44: #{run.1} parent=11 // pred_fallthru
          _
      $region12: #{run.1} parent=5 // pred_fallthru
        _
      %p334 = scmp.lt.s32.totalorder %s19, 8
      // Predicated region
      $region45: #{run.1} parent=5 // pred_check
        %p335 = pneg %p334
      $region46: #{run.1} parent=5 // pred_check_branch
        %337 = sbr.rel (%p335) target = $region48
      $region47: #{run.1} parent=5 // pred_region
        // Predicated region
        $region49: #{run.1} parent=47 // pred_check
          %p338 = pneg %p39
        $region50: #{run.1} parent=47 // pred_check_branch
          %340 = sbr.rel (%p338) target = $region52
        $region51: #{run.1} parent=47 // pred_region
          %p341 = scmp.lt.s32.totalorder %s19, 7
          %s342 = scalar_select %p341, %s19, 7
          %s343 = smul.addr %s342, 8
          %s344 = scalar_lea.vmem %s0, %s343
        $region52: #{run.1} parent=47 // pred_fallthru
          _
      $region48: #{run.1} parent=5 // pred_fallthru
        _
      %p345 = scmp.le.s32.totalorder 1, %s19
      %p346 = scmp.lt.s32.totalorder %s19, 9
      %p347 = pnand %p345, %p346
      %p348 = pneg %p347
      // Predicated region
      $region53: #{run.1} parent=5 // pred_check
        _
      $region54: #{run.1} parent=5 // pred_check_branch
        %350 = sbr.rel (%p347) target = $region56
      $region55: #{run.1} parent=5 // pred_region
        %s351 = ssub.s32 %s19, 1
        // Predicated region
        $region57: #{run.1} parent=55 // pred_check
          %p352 = pneg %p108
        $region58: #{run.1} parent=55 // pred_check_branch
          %354 = sbr.rel (%p352) target = $region60
        $region59: #{run.1} parent=55 // pred_region
          %355 = dma.done [#allocation6], 16384
        $region60: #{run.1} parent=55 // pred_fallthru
          _
        // Predicated region
        $region61: #{run.1} parent=55 // pred_check
          %p356 = pneg %p150
        $region62: #{run.1} parent=55 // pred_check_branch
          %358 = sbr.rel (%p356) target = $region64
        $region63: #{run.1} parent=55 // pred_region
          %359 = dma.done [#allocation8], 16384
        $region64: #{run.1} parent=55 // pred_fallthru
          _
        // Predicated region
        $region65: #{run.1} parent=55 // pred_check
          %p360 = pneg %p192
        $region66: #{run.1} parent=55 // pred_check_branch
          %362 = sbr.rel (%p360) target = $region68
        $region67: #{run.1} parent=55 // pred_region
          %363 = dma.done [#allocation8], 2048
        $region68: #{run.1} parent=55 // pred_fallthru
          _
        %p364 = scmp.lt.s32.totalorder %s24, 7
        %s365 = scalar_select %p364, %s24, 7
        %s366 = smul.addr %s365, 8
        %s367 = scalar_lea.vmem %s0, %s366
        %p368 = pneg %p45
        %p369 = pneg %p42
        %p370 = pneg %p66
        %p371 = pneg %p63
        %p372 = pneg %p87
        %p373 = pneg %p84
        %p374 = pneg %p108
        %p375 = pneg %p105
        %p376 = pneg %p129
        %p377 = pneg %p126
        %p378 = pneg %p150
        %p379 = pneg %p147
        %p380 = pneg %p171
        %p381 = pneg %p168
        %p382 = pneg %p192
        %p383 = pneg %p189
        %p384 = pneg %p213
        %p385 = pneg %p210
        %p386 = pneg %p239
        %p387 = pneg %p236
        %p388 = scmp.lt.s32.totalorder %s24, 7
        %s389 = scalar_select %p388, %s24, 7
        %s390 = smul.addr %s389, 8
        %s391 = scalar_lea.vmem %s9, %s390
        %p392 = pneg %p265
        %p393 = pneg %p262
        %p394 = scmp.lt.s32.totalorder %s24, 7
        %s395 = scalar_select %p394, %s24, 7
        %s396 = smul.addr %s395, 8
        %s397 = scalar_lea.vmem %s10, %s396
        %p398 = scmp.lt.s32.totalorder %s24, 7
        %s399 = scalar_select %p398, %s24, 7
        %s400 = smul.addr %s399, 8
        %s401 = scalar_lea.vmem %s0, %s400
        %p402 = scmp.lt.s32.totalorder %s24, 7
        %s403 = scalar_select %p402, %s24, 7
        %s404 = smul.addr %s403, 8
        %s405 = scalar_lea.vmem %s9, %s404
        %p406 = scmp.lt.s32.totalorder %s24, 7
        %s407 = scalar_select %p406, %s24, 7
        %s408 = smul.addr %s407, 8
        %s409 = scalar_lea.vmem %s10, %s408
        %p410 = scmp.eq.s32.totalorder %s24, 0
        // Predicated region
        $region69: #{run.1} parent=55 // pred_check
          %p411 = pneg %p410
        $region70: #{run.1} parent=55 // pred_check_branch
          %413 = sbr.rel (%p411) target = $region72
        $region71: #{run.1} parent=55 // pred_region
          %v414 = vld [vmem:[%s1] sm:$0xff]
          %v415 = vld [vmem:[%s1 + $0x8] sm:$0xff]
          %416 = vst [vmem:[#allocation2] sm:$0xff] %v414
          %417 = vst [vmem:[#allocation2 + $0x8] sm:$0xff] %v415
          %v418 = vlaneseq
          %v419 = vshrl.u32 %v418, 7
          %vm420 = vcmp.lt.s32.totalorder %v419, 2
          %v421 = vsel %vm420, 0.0, 1.0
          %422 = vst [vmem:[#allocation3] sm:$0xff] %v421
          %v423 = vld [vmem:[%s401] sm:$0xff]
          %424 = vst [vmem:[#allocation4] sm:$0xff] %v423
        $region72: #{run.1} parent=55 // pred_fallthru
          _
        %v425 = vld [vmem:[#allocation3] sm:$0xff]
        %v426 = vrot.slane %v425, 4
        %v427 = vmin.f32 %v425, %v426
        %v428 = vrot.slane %v427, 2
        %v429 = vmin.f32 %v427, %v428
        %v430 = vrot.slane %v429, 1
        %v431 = vmin.f32 %v429, %v430
        %vm432 = vcmp.lt.f32.partialorder %v431, 0.5
        %v433 = vld [vmem:[%s401] sm:$0xff]
        %v434 = vlaneseq
        %v435 = vand.u32 %v434, 127
        %436 = vset.pattern.permute.xlu0 0
        %437 = vperm.xlu0 %436, %v433
        %v438 = vpop.permute.xlu0 %437
        %vm439 = vcmp.eq.s32.totalorder %v435, %v438
        %v440 = vsel %vm439, 1, 0
        %v441 = vcvt.s32.f32 %v440
        %v442 = vld [vmem:[%s2] sm:$0xff]
        %v443 = vld [vmem:[%s2 + $0x8] sm:$0xff]
        %v444 = vld [vmem:[%s2 + $0x10] sm:$0xff]
        %v445 = vld [vmem:[%s2 + $0x18] sm:$0xff]
        %v446 = vld [vmem:[%s2 + $0x20] sm:$0xff]
        %v447 = vld [vmem:[%s2 + $0x28] sm:$0xff]
        %v448 = vld [vmem:[%s2 + $0x30] sm:$0xff]
        %v449 = vld [vmem:[%s2 + $0x38] sm:$0xff]
        %v450 = vld [vmem:[%s2 + $0x40] sm:$0xff]
        %v451 = vld [vmem:[%s2 + $0x48] sm:$0xff]
        %v452 = vld [vmem:[%s2 + $0x50] sm:$0xff]
        %v453 = vld [vmem:[%s2 + $0x58] sm:$0xff]
        %v454 = vld [vmem:[%s2 + $0x60] sm:$0xff]
        %v455 = vld [vmem:[%s2 + $0x68] sm:$0xff]
        %v456 = vld [vmem:[%s2 + $0x70] sm:$0xff]
        %v457 = vld [vmem:[%s2 + $0x78] sm:$0xff]
        %458 = vmatprep.subr.mxu0 0.0
        %459 = vmatpush1.msra.mxu0 %v442
        %460 = vmatprep.subr.mxu0 0.0
        %461 = vmatpush1.msra.mxu0 %v443
        %462 = vmatprep.subr.mxu0 0.0
        %463 = vmatpush1.msra.mxu0 %v444
        %464 = vmatprep.subr.mxu0 0.0
        %465 = vmatpush1.msra.mxu0 %v445
        %466 = vmatprep.subr.mxu0 0.0
        %467 = vmatpush1.msra.mxu0 %v446
        %468 = vmatprep.subr.mxu0 0.0
        %469 = vmatpush1.msra.mxu0 %v447
        %470 = vmatprep.subr.mxu0 0.0
        %471 = vmatpush1.msra.mxu0 %v448
        %472 = vmatprep.subr.mxu0 0.0
        %473 = vmatpush1.msra.mxu0 %v449
        %474 = vmatprep.subr.mxu0 0.0
        %475 = vmatpush1.msra.mxu0 %v450
        %476 = vmatprep.subr.mxu0 0.0
        %477 = vmatpush1.msra.mxu0 %v451
        %478 = vmatprep.subr.mxu0 0.0
        %479 = vmatpush1.msra.mxu0 %v452
        %480 = vmatprep.subr.mxu0 0.0
        %481 = vmatpush1.msra.mxu0 %v453
        %482 = vmatprep.subr.mxu0 0.0
        %483 = vmatpush1.msra.mxu0 %v454
        %484 = vmatprep.subr.mxu0 0.0
        %485 = vmatpush1.msra.mxu0 %v455
        %486 = vmatprep.subr.mxu0 0.0
        %487 = vmatpush1.msra.mxu0 %v456
        %488 = vmatprep.subr.mxu0 0.0
        %489 = vmatpush1.msra.mxu0 %v457
        %490 = vmatprep.subr.mxu0 0.0
        %491 = vmatpush1.msra.mxu0 0.0
        %492 = vmatprep.subr.mxu0 0.0
        %493 = vmatpush1.msra.mxu0 0.0
        %494 = vmatprep.subr.mxu0 0.0
        %495 = vmatpush1.msra.mxu0 0.0
        %496 = vmatprep.subr.mxu0 0.0
        %497 = vmatpush1.msra.mxu0 0.0
        %498 = vmatprep.subr.mxu0 0.0
        %499 = vmatpush1.msra.mxu0 0.0
        %500 = vmatprep.subr.mxu0 0.0
        %501 = vmatpush1.msra.mxu0 0.0
        %502 = vmatprep.subr.mxu0 0.0
        %503 = vmatpush1.msra.mxu0 0.0
        %504 = vmatprep.subr.mxu0 0.0
        %505 = vmatpush1.msra.mxu0 0.0
        %506 = vmatprep.subr.mxu0 0.0
        %507 = vmatpush1.msra.mxu0 0.0
        %508 = vmatprep.subr.mxu0 0.0
        %509 = vmatpush1.msra.mxu0 0.0
        %510 = vmatprep.subr.mxu0 0.0
        %511 = vmatpush1.msra.mxu0 0.0
        %512 = vmatprep.subr.mxu0 0.0
        %513 = vmatpush1.msra.mxu0 0.0
        %514 = vmatprep.subr.mxu0 0.0
        %515 = vmatpush1.msra.mxu0 0.0
        %516 = vmatprep.subr.mxu0 0.0
        %517 = vmatpush1.msra.mxu0 0.0
        %518 = vmatprep.subr.mxu0 0.0
        %519 = vmatpush1.msra.mxu0 0.0
        %520 = vmatprep.subr.mxu0 0.0
        %521 = vmatpush1.msra.mxu0 0.0
        %522 = vmatprep.mubr.f32.mxu0 0.0
        %523 = vmatmul.mubr.f32.gmra.mrb[0].mxu0 %v441
        %v524 = vpop.f32.mrb[0].mxu0
        %v525 = vadd.f32 0.0, %v524
        %v526 = vpop.f32.mrb[0].mxu0
        %527 = vdwg.mxu0
        %v528 = vmax.f32 %v525, 0.0
        %v529 = vld [vmem:[#allocation2] sm:$0xff]
        %v530 = vld [vmem:[#allocation5] sm:$0xff]
        %v531 = vld [vmem:[#allocation5 + $0x8] sm:$0xff]
        %v532 = vld [vmem:[#allocation5 + $0x10] sm:$0xff]
        %v533 = vld [vmem:[#allocation5 + $0x18] sm:$0xff]
        %v534 = vld [vmem:[#allocation5 + $0x20] sm:$0xff]
        %v535 = vld [vmem:[#allocation5 + $0x28] sm:$0xff]
        %v536 = vld [vmem:[#allocation5 + $0x30] sm:$0xff]
        %v537 = vld [vmem:[#allocation5 + $0x38] sm:$0xff]
        %v538 = vld [vmem:[#allocation5 + $0x40] sm:$0xff]
        %v539 = vld [vmem:[#allocation5 + $0x48] sm:$0xff]
        %v540 = vld [vmem:[#allocation5 + $0x50] sm:$0xff]
        %v541 = vld [vmem:[#allocation5 + $0x58] sm:$0xff]
        %v542 = vld [vmem:[#allocation5 + $0x60] sm:$0xff]
        %v543 = vld [vmem:[#allocation5 + $0x68] sm:$0xff]
        %v544 = vld [vmem:[#allocation5 + $0x70] sm:$0xff]
        %v545 = vld [vmem:[#allocation5 + $0x78] sm:$0xff]
        %v546 = vld [vmem:[#allocation5 + $0x80] sm:$0xff]
        %v547 = vld [vmem:[#allocation5 + $0x88] sm:$0xff]
        %v548 = vld [vmem:[#allocation5 + $0x90] sm:$0xff]
        %v549 = vld [vmem:[#allocation5 + $0x98] sm:$0xff]
        %v550 = vld [vmem:[#allocation5 + $0xa0] sm:$0xff]
        %v551 = vld [vmem:[#allocation5 + $0xa8] sm:$0xff]
        %v552 = vld [vmem:[#allocation5 + $0xb0] sm:$0xff]
        %v553 = vld [vmem:[#allocation5 + $0xb8] sm:$0xff]
        %v554 = vld [vmem:[#allocation5 + $0xc0] sm:$0xff]
        %v555 = vld [vmem:[#allocation5 + $0xc8] sm:$0xff]
        %v556 = vld [vmem:[#allocation5 + $0xd0] sm:$0xff]
        %v557 = vld [vmem:[#allocation5 + $0xd8] sm:$0xff]
        %v558 = vld [vmem:[#allocation5 + $0xe0] sm:$0xff]
        %v559 = vld [vmem:[#allocation5 + $0xe8] sm:$0xff]
        %v560 = vld [vmem:[#allocation5 + $0xf0] sm:$0xff]
        %v561 = vld [vmem:[#allocation5 + $0xf8] sm:$0xff]
        %v562 = vld [vmem:[#allocation5 + $0x100] sm:$0xff]
        %v563 = vld [vmem:[#allocation5 + $0x108] sm:$0xff]
        %v564 = vld [vmem:[#allocation5 + $0x110] sm:$0xff]
        %v565 = vld [vmem:[#allocation5 + $0x118] sm:$0xff]
        %v566 = vld [vmem:[#allocation5 + $0x120] sm:$0xff]
        %v567 = vld [vmem:[#allocation5 + $0x128] sm:$0xff]
        %v568 = vld [vmem:[#allocation5 + $0x130] sm:$0xff]
        %v569 = vld [vmem:[#allocation5 + $0x138] sm:$0xff]
        %v570 = vld [vmem:[#allocation5 + $0x140] sm:$0xff]
        %v571 = vld [vmem:[#allocation5 + $0x148] sm:$0xff]
        %v572 = vld [vmem:[#allocation5 + $0x150] sm:$0xff]
        %v573 = vld [vmem:[#allocation5 + $0x158] sm:$0xff]
        %v574 = vld [vmem:[#allocation5 + $0x160] sm:$0xff]
        %v575 = vld [vmem:[#allocation5 + $0x168] sm:$0xff]
        %v576 = vld [vmem:[#allocation5 + $0x170] sm:$0xff]
        %v577 = vld [vmem:[#allocation5 + $0x178] sm:$0xff]
        %v578 = vld [vmem:[#allocation5 + $0x180] sm:$0xff]
        %v579 = vld [vmem:[#allocation5 + $0x188] sm:$0xff]
        %v580 = vld [vmem:[#allocation5 + $0x190] sm:$0xff]
        %v581 = vld [vmem:[#allocation5 + $0x198] sm:$0xff]
        %v582 = vld [vmem:[#allocation5 + $0x1a0] sm:$0xff]
        %v583 = vld [vmem:[#allocation5 + $0x1a8] sm:$0xff]
        %v584 = vld [vmem:[#allocation5 + $0x1b0] sm:$0xff]
        %v585 = vld [vmem:[#allocation5 + $0x1b8] sm:$0xff]
        %v586 = vld [vmem:[#allocation5 + $0x1c0] sm:$0xff]
        %v587 = vld [vmem:[#allocation5 + $0x1c8] sm:$0xff]
        %v588 = vld [vmem:[#allocation5 + $0x1d0] sm:$0xff]
        %v589 = vld [vmem:[#allocation5 + $0x1d8] sm:$0xff]
        %v590 = vld [vmem:[#allocation5 + $0x1e0] sm:$0xff]
        %v591 = vld [vmem:[#allocation5 + $0x1e8] sm:$0xff]
        %v592 = vld [vmem:[#allocation5 + $0x1f0] sm:$0xff]
        %v593 = vld [vmem:[#allocation5 + $0x1f8] sm:$0xff]
        %v594 = vld [vmem:[#allocation5 + $0x200] sm:$0xff]
        %v595 = vld [vmem:[#allocation5 + $0x208] sm:$0xff]
        %v596 = vld [vmem:[#allocation5 + $0x210] sm:$0xff]
        %v597 = vld [vmem:[#allocation5 + $0x218] sm:$0xff]
        %v598 = vld [vmem:[#allocation5 + $0x220] sm:$0xff]
        %v599 = vld [vmem:[#allocation5 + $0x228] sm:$0xff]
        %v600 = vld [vmem:[#allocation5 + $0x230] sm:$0xff]
        %v601 = vld [vmem:[#allocation5 + $0x238] sm:$0xff]
        %v602 = vld [vmem:[#allocation5 + $0x240] sm:$0xff]
        %v603 = vld [vmem:[#allocation5 + $0x248] sm:$0xff]
        %v604 = vld [vmem:[#allocation5 + $0x250] sm:$0xff]
        %v605 = vld [vmem:[#allocation5 + $0x258] sm:$0xff]
        %v606 = vld [vmem:[#allocation5 + $0x260] sm:$0xff]
        %v607 = vld [vmem:[#allocation5 + $0x268] sm:$0xff]
        %v608 = vld [vmem:[#allocation5 + $0x270] sm:$0xff]
        %v609 = vld [vmem:[#allocation5 + $0x278] sm:$0xff]
        %v610 = vld [vmem:[#allocation5 + $0x280] sm:$0xff]
        %v611 = vld [vmem:[#allocation5 + $0x288] sm:$0xff]
        %v612 = vld [vmem:[#allocation5 + $0x290] sm:$0xff]
        %v613 = vld [vmem:[#allocation5 + $0x298] sm:$0xff]
        %v614 = vld [vmem:[#allocation5 + $0x2a0] sm:$0xff]
        %v615 = vld [vmem:[#allocation5 + $0x2a8] sm:$0xff]
        %v616 = vld [vmem:[#allocation5 + $0x2b0] sm:$0xff]
        %v617 = vld [vmem:[#allocation5 + $0x2b8] sm:$0xff]
        %v618 = vld [vmem:[#allocation5 + $0x2c0] sm:$0xff]
        %v619 = vld [vmem:[#allocation5 + $0x2c8] sm:$0xff]
        %v620 = vld [vmem:[#allocation5 + $0x2d0] sm:$0xff]
        %v621 = vld [vmem:[#allocation5 + $0x2d8] sm:$0xff]
        %v622 = vld [vmem:[#allocation5 + $0x2e0] sm:$0xff]
        %v623 = vld [vmem:[#allocation5 + $0x2e8] sm:$0xff]
        %v624 = vld [vmem:[#allocation5 + $0x2f0] sm:$0xff]
        %v625 = vld [vmem:[#allocation5 + $0x2f8] sm:$0xff]
        %v626 = vld [vmem:[#allocation5 + $0x300] sm:$0xff]
        %v627 = vld [vmem:[#allocation5 + $0x308] sm:$0xff]
        %v628 = vld [vmem:[#allocation5 + $0x310] sm:$0xff]
        %v629 = vld [vmem:[#allocation5 + $0x318] sm:$0xff]
        %v630 = vld [vmem:[#allocation5 + $0x320] sm:$0xff]
        %v631 = vld [vmem:[#allocation5 + $0x328] sm:$0xff]
        %v632 = vld [vmem:[#allocation5 + $0x330] sm:$0xff]
        %v633 = vld [vmem:[#allocation5 + $0x338] sm:$0xff]
        %v634 = vld [vmem:[#allocation5 + $0x340] sm:$0xff]
        %v635 = vld [vmem:[#allocation5 + $0x348] sm:$0xff]
        %v636 = vld [vmem:[#allocation5 + $0x350] sm:$0xff]
        %v637 = vld [vmem:[#allocation5 + $0x358] sm:$0xff]
        %v638 = vld [vmem:[#allocation5 + $0x360] sm:$0xff]
        %v639 = vld [vmem:[#allocation5 + $0x368] sm:$0xff]
        %v640 = vld [vmem:[#allocation5 + $0x370] sm:$0xff]
        %v641 = vld [vmem:[#allocation5 + $0x378] sm:$0xff]
        %v642 = vld [vmem:[#allocation5 + $0x380] sm:$0xff]
        %v643 = vld [vmem:[#allocation5 + $0x388] sm:$0xff]
        %v644 = vld [vmem:[#allocation5 + $0x390] sm:$0xff]
        %v645 = vld [vmem:[#allocation5 + $0x398] sm:$0xff]
        %v646 = vld [vmem:[#allocation5 + $0x3a0] sm:$0xff]
        %v647 = vld [vmem:[#allocation5 + $0x3a8] sm:$0xff]
        %v648 = vld [vmem:[#allocation5 + $0x3b0] sm:$0xff]
        %v649 = vld [vmem:[#allocation5 + $0x3b8] sm:$0xff]
        %v650 = vld [vmem:[#allocation5 + $0x3c0] sm:$0xff]
        %v651 = vld [vmem:[#allocation5 + $0x3c8] sm:$0xff]
        %v652 = vld [vmem:[#allocation5 + $0x3d0] sm:$0xff]
        %v653 = vld [vmem:[#allocation5 + $0x3d8] sm:$0xff]
        %v654 = vld [vmem:[#allocation5 + $0x3e0] sm:$0xff]
        %v655 = vld [vmem:[#allocation5 + $0x3e8] sm:$0xff]
        %v656 = vld [vmem:[#allocation5 + $0x3f0] sm:$0xff]
        %v657 = vld [vmem:[#allocation5 + $0x3f8] sm:$0xff]
        %658 = vmatprep.subr.mxu0 %v595
        %659 = vmatpush1.msra.mxu0 %v594
        %660 = vmatprep.subr.mxu0 %v599
        %661 = vmatpush1.msra.mxu0 %v598
        %662 = vmatprep.subr.mxu0 %v603
        %663 = vmatpush1.msra.mxu0 %v602
        %664 = vmatprep.subr.mxu0 %v607
        %665 = vmatpush1.msra.mxu0 %v606
        %666 = vmatprep.subr.mxu0 %v611
        %667 = vmatpush1.msra.mxu0 %v610
        %668 = vmatprep.subr.mxu0 %v615
        %669 = vmatpush1.msra.mxu0 %v614
        %670 = vmatprep.subr.mxu0 %v619
        %671 = vmatpush1.msra.mxu0 %v618
        %672 = vmatprep.subr.mxu0 %v623
        %673 = vmatpush1.msra.mxu0 %v622
        %674 = vmatprep.subr.mxu0 %v627
        %675 = vmatpush1.msra.mxu0 %v626
        %676 = vmatprep.subr.mxu0 %v631
        %677 = vmatpush1.msra.mxu0 %v630
        %678 = vmatprep.subr.mxu0 %v635
        %679 = vmatpush1.msra.mxu0 %v634
        %680 = vmatprep.subr.mxu0 %v639
        %681 = vmatpush1.msra.mxu0 %v638
        %682 = vmatprep.subr.mxu0 %v643
        %683 = vmatpush1.msra.mxu0 %v642
        %684 = vmatprep.subr.mxu0 %v647
        %685 = vmatpush1.msra.mxu0 %v646
        %686 = vmatprep.subr.mxu0 %v651
        %687 = vmatpush1.msra.mxu0 %v650
        %688 = vmatprep.subr.mxu0 %v655
        %689 = vmatpush1.msra.mxu0 %v654
        %690 = vmatprep.subr.mxu0 0.0
        %691 = vmatpush1.msra.mxu0 0.0
        %692 = vmatprep.subr.mxu0 0.0
        %693 = vmatpush1.msra.mxu0 0.0
        %694 = vmatprep.subr.mxu0 0.0
        %695 = vmatpush1.msra.mxu0 0.0
        %696 = vmatprep.subr.mxu0 0.0
        %697 = vmatpush1.msra.mxu0 0.0
        %698 = vmatprep.subr.mxu0 0.0
        %699 = vmatpush1.msra.mxu0 0.0
        %700 = vmatprep.subr.mxu0 0.0
        %701 = vmatpush1.msra.mxu0 0.0
        %702 = vmatprep.subr.mxu0 0.0
        %703 = vmatpush1.msra.mxu0 0.0
        %704 = vmatprep.subr.mxu0 0.0
        %705 = vmatpush1.msra.mxu0 0.0
        %706 = vmatprep.subr.mxu0 0.0
        %707 = vmatpush1.msra.mxu0 0.0
        %708 = vmatprep.subr.mxu0 0.0
        %709 = vmatpush1.msra.mxu0 0.0
        %710 = vmatprep.subr.mxu0 0.0
        %711 = vmatpush1.msra.mxu0 0.0
        %712 = vmatprep.subr.mxu0 0.0
        %713 = vmatpush1.msra.mxu0 0.0
        %714 = vmatprep.subr.mxu0 0.0
        %715 = vmatpush1.msra.mxu0 0.0
        %716 = vmatprep.subr.mxu0 0.0
        %717 = vmatpush1.msra.mxu0 0.0
        %718 = vmatprep.subr.mxu0 0.0
        %719 = vmatpush1.msra.mxu0 0.0
        %720 = vmatprep.subr.mxu0 0.0
        %721 = vmatpush1.msra.mxu0 0.0
        %722 = vmatprep.mubr.f32.mxu0 0.0
        %723 = vmatmul.mubr.f32.gmra.mrb[0].mxu0 %v529
        %v724 = vpop.f32.mrb[0].mxu0
        %v725 = vadd.f32 0.0, %v724
        %v726 = vpop.f32.mrb[0].mxu0
        %v727 = vadd.f32 0.0, %v726
        %728 = vdwg.mxu0
        %729 = vmatprep.subr.mxu0 %v597
        %730 = vmatpush1.msra.mxu0 %v596
        %731 = vmatprep.subr.mxu0 %v601
        %732 = vmatpush1.msra.mxu0 %v600
        %733 = vmatprep.subr.mxu0 %v605
        %734 = vmatpush1.msra.mxu0 %v604
        %735 = vmatprep.subr.mxu0 %v609
        %736 = vmatpush1.msra.mxu0 %v608
        %737 = vmatprep.subr.mxu0 %v613
        %738 = vmatpush1.msra.mxu0 %v612
        %739 = vmatprep.subr.mxu0 %v617
        %740 = vmatpush1.msra.mxu0 %v616
        %741 = vmatprep.subr.mxu0 %v621
        %742 = vmatpush1.msra.mxu0 %v620
        %743 = vmatprep.subr.mxu0 %v625
        %744 = vmatpush1.msra.mxu0 %v624
        %745 = vmatprep.subr.mxu0 %v629
        %746 = vmatpush1.msra.mxu0 %v628
        %747 = vmatprep.subr.mxu0 %v633
        %748 = vmatpush1.msra.mxu0 %v632
        %749 = vmatprep.subr.mxu0 %v637
        %750 = vmatpush1.msra.mxu0 %v636
        %751 = vmatprep.subr.mxu0 %v641
        %752 = vmatpush1.msra.mxu0 %v640
        %753 = vmatprep.subr.mxu0 %v645
        %754 = vmatpush1.msra.mxu0 %v644
        %755 = vmatprep.subr.mxu0 %v649
        %756 = vmatpush1.msra.mxu0 %v648
        %757 = vmatprep.subr.mxu0 %v653
        %758 = vmatpush1.msra.mxu0 %v652
        %759 = vmatprep.subr.mxu0 %v657
        %760 = vmatpush1.msra.mxu0 %v656
        %761 = vmatprep.subr.mxu0 0.0
        %762 = vmatpush1.msra.mxu0 0.0
        %763 = vmatprep.subr.mxu0 0.0
        %764 = vmatpush1.msra.mxu0 0.0
        %765 = vmatprep.subr.mxu0 0.0
        %766 = vmatpush1.msra.mxu0 0.0
        %767 = vmatprep.subr.mxu0 0.0
        %768 = vmatpush1.msra.mxu0 0.0
        %769 = vmatprep.subr.mxu0 0.0
        %770 = vmatpush1.msra.mxu0 0.0
        %771 = vmatprep.subr.mxu0 0.0
        %772 = vmatpush1.msra.mxu0 0.0
        %773 = vmatprep.subr.mxu0 0.0
        %774 = vmatpush1.msra.mxu0 0.0
        %775 = vmatprep.subr.mxu0 0.0
        %776 = vmatpush1.msra.mxu0 0.0
        %777 = vmatprep.subr.mxu0 0.0
        %778 = vmatpush1.msra.mxu0 0.0
        %779 = vmatprep.subr.mxu0 0.0
        %780 = vmatpush1.msra.mxu0 0.0
        %781 = vmatprep.subr.mxu0 0.0
        %782 = vmatpush1.msra.mxu0 0.0
        %783 = vmatprep.subr.mxu0 0.0
        %784 = vmatpush1.msra.mxu0 0.0
        %785 = vmatprep.subr.mxu0 0.0
        %786 = vmatpush1.msra.mxu0 0.0
        %787 = vmatprep.subr.mxu0 0.0
        %788 = vmatpush1.msra.mxu0 0.0
        %789 = vmatprep.subr.mxu0 0.0
        %790 = vmatpush1.msra.mxu0 0.0
        %791 = vmatprep.subr.mxu0 0.0
        %792 = vmatpush1.msra.mxu0 0.0
        %793 = vmatprep.mubr.f32.mxu0 0.0
        %794 = vmatmul.mubr.f32.gmra.mrb[0].mxu0 %v529
        %v795 = vpop.f32.mrb[0].mxu0
        %v796 = vadd.f32 0.0, %v795
        %v797 = vpop.f32.mrb[0].mxu0
        %v798 = vadd.f32 0.0, %v797
        %799 = vdwg.mxu0
        %800 = vmatprep.subr.mxu0 %v531
        %801 = vmatpush1.msra.mxu0 %v530
        %802 = vmatprep.subr.mxu0 %v535
        %803 = vmatpush1.msra.mxu0 %v534
        %804 = vmatprep.subr.mxu0 %v539
        %805 = vmatpush1.msra.mxu0 %v538
        %806 = vmatprep.subr.mxu0 %v543
        %807 = vmatpush1.msra.mxu0 %v542
        %808 = vmatprep.subr.mxu0 %v547
        %809 = vmatpush1.msra.mxu0 %v546
        %810 = vmatprep.subr.mxu0 %v551
        %811 = vmatpush1.msra.mxu0 %v550
        %812 = vmatprep.subr.mxu0 %v555
        %813 = vmatpush1.msra.mxu0 %v554
        %814 = vmatprep.subr.mxu0 %v559
        %815 = vmatpush1.msra.mxu0 %v558
        %816 = vmatprep.subr.mxu0 %v563
        %817 = vmatpush1.msra.mxu0 %v562
        %818 = vmatprep.subr.mxu0 %v567
        %819 = vmatpush1.msra.mxu0 %v566
        %820 = vmatprep.subr.mxu0 %v571
        %821 = vmatpush1.msra.mxu0 %v570
        %822 = vmatprep.subr.mxu0 %v575
        %823 = vmatpush1.msra.mxu0 %v574
        %824 = vmatprep.subr.mxu0 %v579
        %825 = vmatpush1.msra.mxu0 %v578
        %826 = vmatprep.subr.mxu0 %v583
        %827 = vmatpush1.msra.mxu0 %v582
        %828 = vmatprep.subr.mxu0 %v587
        %829 = vmatpush1.msra.mxu0 %v586
        %830 = vmatprep.subr.mxu0 %v591
        %831 = vmatpush1.msra.mxu0 %v590
        %832 = vmatprep.subr.mxu0 0.0
        %833 = vmatpush1.msra.mxu0 0.0
        %834 = vmatprep.subr.mxu0 0.0
        %835 = vmatpush1.msra.mxu0 0.0
        %836 = vmatprep.subr.mxu0 0.0
        %837 = vmatpush1.msra.mxu0 0.0
        %838 = vmatprep.subr.mxu0 0.0
        %839 = vmatpush1.msra.mxu0 0.0
        %840 = vmatprep.subr.mxu0 0.0
        %841 = vmatpush1.msra.mxu0 0.0
        %842 = vmatprep.subr.mxu0 0.0
        %843 = vmatpush1.msra.mxu0 0.0
        %844 = vmatprep.subr.mxu0 0.0
        %845 = vmatpush1.msra.mxu0 0.0
        %846 = vmatprep.subr.mxu0 0.0
        %847 = vmatpush1.msra.mxu0 0.0
        %848 = vmatprep.subr.mxu0 0.0
        %849 = vmatpush1.msra.mxu0 0.0
        %850 = vmatprep.subr.mxu0 0.0
        %851 = vmatpush1.msra.mxu0 0.0
        %852 = vmatprep.subr.mxu0 0.0
        %853 = vmatpush1.msra.mxu0 0.0
        %854 = vmatprep.subr.mxu0 0.0
        %855 = vmatpush1.msra.mxu0 0.0
        %856 = vmatprep.subr.mxu0 0.0
        %857 = vmatpush1.msra.mxu0 0.0
        %858 = vmatprep.subr.mxu0 0.0
        %859 = vmatpush1.msra.mxu0 0.0
        %860 = vmatprep.subr.mxu0 0.0
        %861 = vmatpush1.msra.mxu0 0.0
        %862 = vmatprep.subr.mxu0 0.0
        %863 = vmatpush1.msra.mxu0 0.0
        %864 = vmatprep.mubr.f32.mxu0 0.0
        %865 = vmatmul.mubr.f32.gmra.mrb[0].mxu0 %v528
        %v866 = vpop.f32.mrb[0].mxu0
        %v867 = vadd.f32 %v725, %v866
        %v868 = vpop.f32.mrb[0].mxu0
        %v869 = vadd.f32 %v727, %v868
        %870 = vdwg.mxu0
        %871 = vmatprep.subr.mxu0 %v533
        %872 = vmatpush1.msra.mxu0 %v532
        %873 = vmatprep.subr.mxu0 %v537
        %874 = vmatpush1.msra.mxu0 %v536
        %875 = vmatprep.subr.mxu0 %v541
        %876 = vmatpush1.msra.mxu0 %v540
        %877 = vmatprep.subr.mxu0 %v545
        %878 = vmatpush1.msra.mxu0 %v544
        %879 = vmatprep.subr.mxu0 %v549
        %880 = vmatpush1.msra.mxu0 %v548
        %881 = vmatprep.subr.mxu0 %v553
        %882 = vmatpush1.msra.mxu0 %v552
        %883 = vmatprep.subr.mxu0 %v557
        %884 = vmatpush1.msra.mxu0 %v556
        %885 = vmatprep.subr.mxu0 %v561
        %886 = vmatpush1.msra.mxu0 %v560
        %887 = vmatprep.subr.mxu0 %v565
        %888 = vmatpush1.msra.mxu0 %v564
        %889 = vmatprep.subr.mxu0 %v569
        %890 = vmatpush1.msra.mxu0 %v568
        %891 = vmatprep.subr.mxu0 %v573
        %892 = vmatpush1.msra.mxu0 %v572
        %893 = vmatprep.subr.mxu0 %v577
        %894 = vmatpush1.msra.mxu0 %v576
        %895 = vmatprep.subr.mxu0 %v581
        %896 = vmatpush1.msra.mxu0 %v580
        %897 = vmatprep.subr.mxu0 %v585
        %898 = vmatpush1.msra.mxu0 %v584
        %899 = vmatprep.subr.mxu0 %v589
        %900 = vmatpush1.msra.mxu0 %v588
        %901 = vmatprep.subr.mxu0 %v593
        %902 = vmatpush1.msra.mxu0 %v592
        %903 = vmatprep.subr.mxu0 0.0
        %904 = vmatpush1.msra.mxu0 0.0
        %905 = vmatprep.subr.mxu0 0.0
        %906 = vmatpush1.msra.mxu0 0.0
        %907 = vmatprep.subr.mxu0 0.0
        %908 = vmatpush1.msra.mxu0 0.0
        %909 = vmatprep.subr.mxu0 0.0
        %910 = vmatpush1.msra.mxu0 0.0
        %911 = vmatprep.subr.mxu0 0.0
        %912 = vmatpush1.msra.mxu0 0.0
        %913 = vmatprep.subr.mxu0 0.0
        %914 = vmatpush1.msra.mxu0 0.0
        %915 = vmatprep.subr.mxu0 0.0
        %916 = vmatpush1.msra.mxu0 0.0
        %917 = vmatprep.subr.mxu0 0.0
        %918 = vmatpush1.msra.mxu0 0.0
        %919 = vmatprep.subr.mxu0 0.0
        %920 = vmatpush1.msra.mxu0 0.0
        %921 = vmatprep.subr.mxu0 0.0
        %922 = vmatpush1.msra.mxu0 0.0
        %923 = vmatprep.subr.mxu0 0.0
        %924 = vmatpush1.msra.mxu0 0.0
        %925 = vmatprep.subr.mxu0 0.0
        %926 = vmatpush1.msra.mxu0 0.0
        %927 = vmatprep.subr.mxu0 0.0
        %928 = vmatpush1.msra.mxu0 0.0
        %929 = vmatprep.subr.mxu0 0.0
        %930 = vmatpush1.msra.mxu0 0.0
        %931 = vmatprep.subr.mxu0 0.0
        %932 = vmatpush1.msra.mxu0 0.0
        %933 = vmatprep.subr.mxu0 0.0
        %934 = vmatpush1.msra.mxu0 0.0
        %935 = vmatprep.mubr.f32.mxu0 0.0
        %936 = vmatmul.mubr.f32.gmra.mrb[0].mxu0 %v528
        %v937 = vpop.f32.mrb[0].mxu0
        %v938 = vadd.f32 %v796, %v937
        %v939 = vpop.f32.mrb[0].mxu0
        %v940 = vadd.f32 %v798, %v939
        %941 = vdwg.mxu0
        %v942 = vld [vmem:[%s4] sm:$0xf]
        %v944 = vlaneseq
        %v945 = vshrl.u32 %v944, 7
        %v946 = vsub.s32 0, %v945
        %v947 = vrot.slane %v942, %v946
        %v948 = vlaneseq
        %v949 = vshrl.u32 %v948, 7
        %v950 = vsub.s32 1, %v949
        %v951 = vrot.slane %v942, %v950
        %v952 = vlaneseq
        %v953 = vshrl.u32 %v952, 7
        %v954 = vsub.s32 2, %v953
        %v955 = vrot.slane %v942, %v954
        %v956 = vlaneseq
        %v957 = vshrl.u32 %v956, 7
        %v958 = vsub.s32 3, %v957
        %v959 = vrot.slane %v942, %v958
        %v964 = vadd.f32 %v867, %v947
        %v965 = vadd.f32 %v869, %v951
        %v966 = vadd.f32 %v938, %v955
        %v967 = vadd.f32 %v940, %v959
        %v968 = vxor.u32 %v964, 2147483648
        %v969 = vmul.f32 %v968, 1.442695
        %v970 = vpow.pop %v969
        %v971 = vadd.f32 %v970, 1.0
        %v972 = vrcp.pop %v971
        %v973 = vmul.f32 1.0, %v972
        %v974 = vxor.u32 %v965, 2147483648
        %v975 = vmul.f32 %v974, 1.442695
        %v976 = vpow.pop %v975
        %v977 = vadd.f32 %v976, 1.0
        %v978 = vrcp.pop %v977
        %v979 = vmul.f32 1.0, %v978
        %v980 = vmul.f32 %v973, %v967
        %v981 = vadd.f32 %v966, %v980
        %v982 = vtanh.pop %v981
        %v983 = vsub.f32 1.0, %v979
        %v984 = vmul.f32 %v983, %v982
        %v985 = vmul.f32 %v979, %v529
        %v986 = vadd.f32 %v984, %v985
        %987 = vst [vmem:[#allocation2] sm:$0xff] %v986
        %s988 = scalar_lea.vmem [#allocation2], 8
        %v989 = vld [vmem:[%s988] sm:$0xff]
        %v990 = vld [vmem:[#allocation7] sm:$0xff]
        %v991 = vld [vmem:[#allocation7 + $0x8] sm:$0xff]
        %v992 = vld [vmem:[#allocation7 + $0x10] sm:$0xff]
        %v993 = vld [vmem:[#allocation7 + $0x18] sm:$0xff]
        %v994 = vld [vmem:[#allocation7 + $0x20] sm:$0xff]
        %v995 = vld [vmem:[#allocation7 + $0x28] sm:$0xff]
        %v996 = vld [vmem:[#allocation7 + $0x30] sm:$0xff]
        %v997 = vld [vmem:[#allocation7 + $0x38] sm:$0xff]
        %v998 = vld [vmem:[#allocation7 + $0x40] sm:$0xff]
        %v999 = vld [vmem:[#allocation7 + $0x48] sm:$0xff]
        %v1000 = vld [vmem:[#allocation7 + $0x50] sm:$0xff]
        %v1001 = vld [vmem:[#allocation7 + $0x58] sm:$0xff]
        %v1002 = vld [vmem:[#allocation7 + $0x60] sm:$0xff]
        %v1003 = vld [vmem:[#allocation7 + $0x68] sm:$0xff]
        %v1004 = vld [vmem:[#allocation7 + $0x70] sm:$0xff]
        %v1005 = vld [vmem:[#allocation7 + $0x78] sm:$0xff]
        %v1006 = vld [vmem:[#allocation7 + $0x80] sm:$0xff]
        %v1007 = vld [vmem:[#allocation7 + $0x88] sm:$0xff]
        %v1008 = vld [vmem:[#allocation7 + $0x90] sm:$0xff]
        %v1009 = vld [vmem:[#allocation7 + $0x98] sm:$0xff]
        %v1010 = vld [vmem:[#allocation7 + $0xa0] sm:$0xff]
        %v1011 = vld [vmem:[#allocation7 + $0xa8] sm:$0xff]
        %v1012 = vld [vmem:[#allocation7 + $0xb0] sm:$0xff]
        %v1013 = vld [vmem:[#allocation7 + $0xb8] sm:$0xff]
        %v1014 = vld [vmem:[#allocation7 + $0xc0] sm:$0xff]
        %v1015 = vld [vmem:[#allocation7 + $0xc8] sm:$0xff]
        %v1016 = vld [vmem:[#allocation7 + $0xd0] sm:$0xff]
        %v1017 = vld [vmem:[#allocation7 + $0xd8] sm:$0xff]
        %v1018 = vld [vmem:[#allocation7 + $0xe0] sm:$0xff]
        %v1019 = vld [vmem:[#allocation7 + $0xe8] sm:$0xff]
        %v1020 = vld [vmem:[#allocation7 + $0xf0] sm:$0xff]
        %v1021 = vld [vmem:[#allocation7 + $0xf8] sm:$0xff]
        %v1022 = vld [vmem:[#allocation7 + $0x100] sm:$0xff]
        %v1023 = vld [vmem:[#allocation7 + $0x108] sm:$0xff]
        %v1024 = vld [vmem:[#allocation7 + $0x110] sm:$0xff]
        %v1025 = vld [vmem:[#allocation7 + $0x118] sm:$0xff]
        %v1026 = vld [vmem:[#allocation7 + $0x120] sm:$0xff]
        %v1027 = vld [vmem:[#allocation7 + $0x128] sm:$0xff]
        %v1028 = vld [vmem:[#allocation7 + $0x130] sm:$0xff]
        %v1029 = vld [vmem:[#allocation7 + $0x138] sm:$0xff]
        %v1030 = vld [vmem:[#allocation7 + $0x140] sm:$0xff]
        %v1031 = vld [vmem:[#allocation7 + $0x148] sm:$0xff]
        %v1032 = vld [vmem:[#allocation7 + $0x150] sm:$0xff]
        %v1033 = vld [vmem:[#allocation7 + $0x158] sm:$0xff]
        %v1034 = vld [vmem:[#allocation7 + $0x160] sm:$0xff]
        %v1035 = vld [vmem:[#allocation7 + $0x168] sm:$0xff]
        %v1036 = vld [vmem:[#allocation7 + $0x170] sm:$0xff]
        %v1037 = vld [vmem:[#allocation7 + $0x178] sm:$0xff]
        %v1038 = vld [vmem:[#allocation7 + $0x180] sm:$0xff]
        %v1039 = vld [vmem:[#allocation7 + $0x188] sm:$0xff]
        %v1040 = vld [vmem:[#allocation7 + $0x190] sm:$0xff]
        %v1041 = vld [vmem:[#allocation7 + $0x198] sm:$0xff]
        %v1042 = vld [vmem:[#allocation7 + $0x1a0] sm:$0xff]
        %v1043 = vld [vmem:[#allocation7 + $0x1a8] sm:$0xff]
        %v1044 = vld [vmem:[#allocation7 + $0x1b0] sm:$0xff]
        %v1045 = vld [vmem:[#allocation7 + $0x1b8] sm:$0xff]
        %v1046 = vld [vmem:[#allocation7 + $0x1c0] sm:$0xff]
        %v1047 = vld [vmem:[#allocation7 + $0x1c8] sm:$0xff]
        %v1048 = vld [vmem:[#allocation7 + $0x1d0] sm:$0xff]
        %v1049 = vld [vmem:[#allocation7 + $0x1d8] sm:$0xff]
        %v1050 = vld [vmem:[#allocation7 + $0x1e0] sm:$0xff]
        %v1051 = vld [vmem:[#allocation7 + $0x1e8] sm:$0xff]
        %v1052 = vld [vmem:[#allocation7 + $0x1f0] sm:$0xff]
        %v1053 = vld [vmem:[#allocation7 + $0x1f8] sm:$0xff]
        %v1054 = vld [vmem:[#allocation7 + $0x200] sm:$0xff]
        %v1055 = vld [vmem:[#allocation7 + $0x208] sm:$0xff]
        %v1056 = vld [vmem:[#allocation7 + $0x210] sm:$0xff]
        %v1057 = vld [vmem:[#allocation7 + $0x218] sm:$0xff]
        %v1058 = vld [vmem:[#allocation7 + $0x220] sm:$0xff]
        %v1059 = vld [vmem:[#allocation7 + $0x228] sm:$0xff]
        %v1060 = vld [vmem:[#allocation7 + $0x230] sm:$0xff]
        %v1061 = vld [vmem:[#allocation7 + $0x238] sm:$0xff]
        %v1062 = vld [vmem:[#allocation7 + $0x240] sm:$0xff]
        %v1063 = vld [vmem:[#allocation7 + $0x248] sm:$0xff]
        %v1064 = vld [vmem:[#allocation7 + $0x250] sm:$0xff]
        %v1065 = vld [vmem:[#allocation7 + $0x258] sm:$0xff]
        %v1066 = vld [vmem:[#allocation7 + $0x260] sm:$0xff]
        %v1067 = vld [vmem:[#allocation7 + $0x268] sm:$0xff]
        %v1068 = vld [vmem:[#allocation7 + $0x270] sm:$0xff]
        %v1069 = vld [vmem:[#allocation7 + $0x278] sm:$0xff]
        %v1070 = vld [vmem:[#allocation7 + $0x280] sm:$0xff]
        %v1071 = vld [vmem:[#allocation7 + $0x288] sm:$0xff]
        %v1072 = vld [vmem:[#allocation7 + $0x290] sm:$0xff]
        %v1073 = vld [vmem:[#allocation7 + $0x298] sm:$0xff]
        %v1074 = vld [vmem:[#allocation7 + $0x2a0] sm:$0xff]
        %v1075 = vld [vmem:[#allocation7 + $0x2a8] sm:$0xff]
        %v1076 = vld [vmem:[#allocation7 + $0x2b0] sm:$0xff]
        %v1077 = vld [vmem:[#allocation7 + $0x2b8] sm:$0xff]
        %v1078 = vld [vmem:[#allocation7 + $0x2c0] sm:$0xff]
        %v1079 = vld [vmem:[#allocation7 + $0x2c8] sm:$0xff]
        %v1080 = vld [vmem:[#allocation7 + $0x2d0] sm:$0xff]
        %v1081 = vld [vmem:[#allocation7 + $0x2d8] sm:$0xff]
        %v1082 = vld [vmem:[#allocation7 + $0x2e0] sm:$0xff]
        %v1083 = vld [vmem:[#allocation7 + $0x2e8] sm:$0xff]
        %v1084 = vld [vmem:[#allocation7 + $0x2f0] sm:$0xff]
        %v1085 = vld [vmem:[#allocation7 + $0x2f8] sm:$0xff]
        %v1086 = vld [vmem:[#allocation7 + $0x300] sm:$0xff]
        %v1087 = vld [vmem:[#allocation7 + $0x308] sm:$0xff]
        %v1088 = vld [vmem:[#allocation7 + $0x310] sm:$0xff]
        %v1089 = vld [vmem:[#allocation7 + $0x318] sm:$0xff]
        %v1090 = vld [vmem:[#allocation7 + $0x320] sm:$0xff]
        %v1091 = vld [vmem:[#allocation7 + $0x328] sm:$0xff]
        %v1092 = vld [vmem:[#allocation7 + $0x330] sm:$0xff]
        %v1093 = vld [vmem:[#allocation7 + $0x338] sm:$0xff]
        %v1094 = vld [vmem:[#allocation7 + $0x340] sm:$0xff]
        %v1095 = vld [vmem:[#allocation7 + $0x348] sm:$0xff]
        %v1096 = vld [vmem:[#allocation7 + $0x350] sm:$0xff]
        %v1097 = vld [vmem:[#allocation7 + $0x358] sm:$0xff]
        %v1098 = vld [vmem:[#allocation7 + $0x360] sm:$0xff]
        %v1099 = vld [vmem:[#allocation7 + $0x368] sm:$0xff]
        %v1100 = vld [vmem:[#allocation7 + $0x370] sm:$0xff]
        %v1101 = vld [vmem:[#allocation7 + $0x378] sm:$0xff]
        %v1102 = vld [vmem:[#allocation7 + $0x380] sm:$0xff]
        %v1103 = vld [vmem:[#allocation7 + $0x388] sm:$0xff]
        %v1104 = vld [vmem:[#allocation7 + $0x390] sm:$0xff]
        %v1105 = vld [vmem:[#allocation7 + $0x398] sm:$0xff]
        %v1106 = vld [vmem:[#allocation7 + $0x3a0] sm:$0xff]
        %v1107 = vld [vmem:[#allocation7 + $0x3a8] sm:$0xff]
        %v1108 = vld [vmem:[#allocation7 + $0x3b0] sm:$0xff]
        %v1109 = vld [vmem:[#allocation7 + $0x3b8] sm:$0xff]
        %v1110 = vld [vmem:[#allocation7 + $0x3c0] sm:$0xff]
        %v1111 = vld [vmem:[#allocation7 + $0x3c8] sm:$0xff]
        %v1112 = vld [vmem:[#allocation7 + $0x3d0] sm:$0xff]
        %v1113 = vld [vmem:[#allocation7 + $0x3d8] sm:$0xff]
        %v1114 = vld [vmem:[#allocation7 + $0x3e0] sm:$0xff]
        %v1115 = vld [vmem:[#allocation7 + $0x3e8] sm:$0xff]
        %v1116 = vld [vmem:[#allocation7 + $0x3f0] sm:$0xff]
        %v1117 = vld [vmem:[#allocation7 + $0x3f8] sm:$0xff]
        %1118 = vmatprep.subr.mxu0 %v1055
        %1119 = vmatpush1.msra.mxu0 %v1054
        %1120 = vmatprep.subr.mxu0 %v1059
        %1121 = vmatpush1.msra.mxu0 %v1058
        %1122 = vmatprep.subr.mxu0 %v1063
        %1123 = vmatpush1.msra.mxu0 %v1062
        %1124 = vmatprep.subr.mxu0 %v1067
        %1125 = vmatpush1.msra.mxu0 %v1066
        %1126 = vmatprep.subr.mxu0 %v1071
        %1127 = vmatpush1.msra.mxu0 %v1070
        %1128 = vmatprep.subr.mxu0 %v1075
        %1129 = vmatpush1.msra.mxu0 %v1074
        %1130 = vmatprep.subr.mxu0 %v1079
        %1131 = vmatpush1.msra.mxu0 %v1078
        %1132 = vmatprep.subr.mxu0 %v1083
        %1133 = vmatpush1.msra.mxu0 %v1082
        %1134 = vmatprep.subr.mxu0 %v1087
        %1135 = vmatpush1.msra.mxu0 %v1086
        %1136 = vmatprep.subr.mxu0 %v1091
        %1137 = vmatpush1.msra.mxu0 %v1090
        %1138 = vmatprep.subr.mxu0 %v1095
        %1139 = vmatpush1.msra.mxu0 %v1094
        %1140 = vmatprep.subr.mxu0 %v1099
        %1141 = vmatpush1.msra.mxu0 %v1098
        %1142 = vmatprep.subr.mxu0 %v1103
        %1143 = vmatpush1.msra.mxu0 %v1102
        %1144 = vmatprep.subr.mxu0 %v1107
        %1145 = vmatpush1.msra.mxu0 %v1106
        %1146 = vmatprep.subr.mxu0 %v1111
        %1147 = vmatpush1.msra.mxu0 %v1110
        %1148 = vmatprep.subr.mxu0 %v1115
        %1149 = vmatpush1.msra.mxu0 %v1114
        %1150 = vmatprep.subr.mxu0 0.0
        %1151 = vmatpush1.msra.mxu0 0.0
        %1152 = vmatprep.subr.mxu0 0.0
        %1153 = vmatpush1.msra.mxu0 0.0
        %1154 = vmatprep.subr.mxu0 0.0
        %1155 = vmatpush1.msra.mxu0 0.0
        %1156 = vmatprep.subr.mxu0 0.0
        %1157 = vmatpush1.msra.mxu0 0.0
        %1158 = vmatprep.subr.mxu0 0.0
        %1159 = vmatpush1.msra.mxu0 0.0
        %1160 = vmatprep.subr.mxu0 0.0
        %1161 = vmatpush1.msra.mxu0 0.0
        %1162 = vmatprep.subr.mxu0 0.0
        %1163 = vmatpush1.msra.mxu0 0.0
        %1164 = vmatprep.subr.mxu0 0.0
        %1165 = vmatpush1.msra.mxu0 0.0
        %1166 = vmatprep.subr.mxu0 0.0
        %1167 = vmatpush1.msra.mxu0 0.0
        %1168 = vmatprep.subr.mxu0 0.0
        %1169 = vmatpush1.msra.mxu0 0.0
        %1170 = vmatprep.subr.mxu0 0.0
        %1171 = vmatpush1.msra.mxu0 0.0
        %1172 = vmatprep.subr.mxu0 0.0
        %1173 = vmatpush1.msra.mxu0 0.0
        %1174 = vmatprep.subr.mxu0 0.0
        %1175 = vmatpush1.msra.mxu0 0.0
        %1176 = vmatprep.subr.mxu0 0.0
        %1177 = vmatpush1.msra.mxu0 0.0
        %1178 = vmatprep.subr.mxu0 0.0
        %1179 = vmatpush1.msra.mxu0 0.0
        %1180 = vmatprep.subr.mxu0 0.0
        %1181 = vmatpush1.msra.mxu0 0.0
        %1182 = vmatprep.mubr.f32.mxu0 0.0
        %1183 = vmatmul.mubr.f32.gmra.mrb[0].mxu0 %v989
        %v1184 = vpop.f32.mrb[0].mxu0
        %v1185 = vadd.f32 0.0, %v1184
        %v1186 = vpop.f32.mrb[0].mxu0
        %v1187 = vadd.f32 0.0, %v1186
        %1188 = vdwg.mxu0
        %1189 = vmatprep.subr.mxu0 %v1057
        %1190 = vmatpush1.msra.mxu0 %v1056
        %1191 = vmatprep.subr.mxu0 %v1061
        %1192 = vmatpush1.msra.mxu0 %v1060
        %1193 = vmatprep.subr.mxu0 %v1065
        %1194 = vmatpush1.msra.mxu0 %v1064
        %1195 = vmatprep.subr.mxu0 %v1069
        %1196 = vmatpush1.msra.mxu0 %v1068
        %1197 = vmatprep.subr.mxu0 %v1073
        %1198 = vmatpush1.msra.mxu0 %v1072
        %1199 = vmatprep.subr.mxu0 %v1077
        %1200 = vmatpush1.msra.mxu0 %v1076
        %1201 = vmatprep.subr.mxu0 %v1081
        %1202 = vmatpush1.msra.mxu0 %v1080
        %1203 = vmatprep.subr.mxu0 %v1085
        %1204 = vmatpush1.msra.mxu0 %v1084
        %1205 = vmatprep.subr.mxu0 %v1089
        %1206 = vmatpush1.msra.mxu0 %v1088
        %1207 = vmatprep.subr.mxu0 %v1093
        %1208 = vmatpush1.msra.mxu0 %v1092
        %1209 = vmatprep.subr.mxu0 %v1097
        %1210 = vmatpush1.msra.mxu0 %v1096
        %1211 = vmatprep.subr.mxu0 %v1101
        %1212 = vmatpush1.msra.mxu0 %v1100
        %1213 = vmatprep.subr.mxu0 %v1105
        %1214 = vmatpush1.msra.mxu0 %v1104
        %1215 = vmatprep.subr.mxu0 %v1109
        %1216 = vmatpush1.msra.mxu0 %v1108
        %1217 = vmatprep.subr.mxu0 %v1113
        %1218 = vmatpush1.msra.mxu0 %v1112
        %1219 = vmatprep.subr.mxu0 %v1117
        %1220 = vmatpush1.msra.mxu0 %v1116
        %1221 = vmatprep.subr.mxu0 0.0
        %1222 = vmatpush1.msra.mxu0 0.0
        %1223 = vmatprep.subr.mxu0 0.0
        %1224 = vmatpush1.msra.mxu0 0.0
        %1225 = vmatprep.subr.mxu0 0.0
        %1226 = vmatpush1.msra.mxu0 0.0
        %1227 = vmatprep.subr.mxu0 0.0
        %1228 = vmatpush1.msra.mxu0 0.0
        %1229 = vmatprep.subr.mxu0 0.0
        %1230 = vmatpush1.msra.mxu0 0.0
        %1231 = vmatprep.subr.mxu0 0.0
        %1232 = vmatpush1.msra.mxu0 0.0
        %1233 = vmatprep.subr.mxu0 0.0
        %1234 = vmatpush1.msra.mxu0 0.0
        %1235 = vmatprep.subr.mxu0 0.0
        %1236 = vmatpush1.msra.mxu0 0.0
        %1237 = vmatprep.subr.mxu0 0.0
        %1238 = vmatpush1.msra.mxu0 0.0
        %1239 = vmatprep.subr.mxu0 0.0
        %1240 = vmatpush1.msra.mxu0 0.0
        %1241 = vmatprep.subr.mxu0 0.0
        %1242 = vmatpush1.msra.mxu0 0.0
        %1243 = vmatprep.subr.mxu0 0.0
        %1244 = vmatpush1.msra.mxu0 0.0
        %1245 = vmatprep.subr.mxu0 0.0
        %1246 = vmatpush1.msra.mxu0 0.0
        %1247 = vmatprep.subr.mxu0 0.0
        %1248 = vmatpush1.msra.mxu0 0.0
        %1249 = vmatprep.subr.mxu0 0.0
        %1250 = vmatpush1.msra.mxu0 0.0
        %1251 = vmatprep.subr.mxu0 0.0
        %1252 = vmatpush1.msra.mxu0 0.0
        %1253 = vmatprep.mubr.f32.mxu0 0.0
        %1254 = vmatmul.mubr.f32.gmra.mrb[0].mxu0 %v989
        %v1255 = vpop.f32.mrb[0].mxu0
        %v1256 = vadd.f32 0.0, %v1255
        %v1257 = vpop.f32.mrb[0].mxu0
        %v1258 = vadd.f32 0.0, %v1257
        %1259 = vdwg.mxu0
        %1260 = vmatprep.subr.mxu0 %v991
        %1261 = vmatpush1.msra.mxu0 %v990
        %1262 = vmatprep.subr.mxu0 %v995
        %1263 = vmatpush1.msra.mxu0 %v994
        %1264 = vmatprep.subr.mxu0 %v999
        %1265 = vmatpush1.msra.mxu0 %v998
        %1266 = vmatprep.subr.mxu0 %v1003
        %1267 = vmatpush1.msra.mxu0 %v1002
        %1268 = vmatprep.subr.mxu0 %v1007
        %1269 = vmatpush1.msra.mxu0 %v1006
        %1270 = vmatprep.subr.mxu0 %v1011
        %1271 = vmatpush1.msra.mxu0 %v1010
        %1272 = vmatprep.subr.mxu0 %v1015
        %1273 = vmatpush1.msra.mxu0 %v1014
        %1274 = vmatprep.subr.mxu0 %v1019
        %1275 = vmatpush1.msra.mxu0 %v1018
        %1276 = vmatprep.subr.mxu0 %v1023
        %1277 = vmatpush1.msra.mxu0 %v1022
        %1278 = vmatprep.subr.mxu0 %v1027
        %1279 = vmatpush1.msra.mxu0 %v1026
        %1280 = vmatprep.subr.mxu0 %v1031
        %1281 = vmatpush1.msra.mxu0 %v1030
        %1282 = vmatprep.subr.mxu0 %v1035
        %1283 = vmatpush1.msra.mxu0 %v1034
        %1284 = vmatprep.subr.mxu0 %v1039
        %1285 = vmatpush1.msra.mxu0 %v1038
        %1286 = vmatprep.subr.mxu0 %v1043
        %1287 = vmatpush1.msra.mxu0 %v1042
        %1288 = vmatprep.subr.mxu0 %v1047
        %1289 = vmatpush1.msra.mxu0 %v1046
        %1290 = vmatprep.subr.mxu0 %v1051
        %1291 = vmatpush1.msra.mxu0 %v1050
        %1292 = vmatprep.subr.mxu0 0.0
        %1293 = vmatpush1.msra.mxu0 0.0
        %1294 = vmatprep.subr.mxu0 0.0
        %1295 = vmatpush1.msra.mxu0 0.0
        %1296 = vmatprep.subr.mxu0 0.0
        %1297 = vmatpush1.msra.mxu0 0.0
        %1298 = vmatprep.subr.mxu0 0.0
        %1299 = vmatpush1.msra.mxu0 0.0
        %1300 = vmatprep.subr.mxu0 0.0
        %1301 = vmatpush1.msra.mxu0 0.0
        %1302 = vmatprep.subr.mxu0 0.0
        %1303 = vmatpush1.msra.mxu0 0.0
        %1304 = vmatprep.subr.mxu0 0.0
        %1305 = vmatpush1.msra.mxu0 0.0
        %1306 = vmatprep.subr.mxu0 0.0
        %1307 = vmatpush1.msra.mxu0 0.0
        %1308 = vmatprep.subr.mxu0 0.0
        %1309 = vmatpush1.msra.mxu0 0.0
        %1310 = vmatprep.subr.mxu0 0.0
        %1311 = vmatpush1.msra.mxu0 0.0
        %1312 = vmatprep.subr.mxu0 0.0
        %1313 = vmatpush1.msra.mxu0 0.0
        %1314 = vmatprep.subr.mxu0 0.0
        %1315 = vmatpush1.msra.mxu0 0.0
        %1316 = vmatprep.subr.mxu0 0.0
        %1317 = vmatpush1.msra.mxu0 0.0
        %1318 = vmatprep.subr.mxu0 0.0
        %1319 = vmatpush1.msra.mxu0 0.0
        %1320 = vmatprep.subr.mxu0 0.0
        %1321 = vmatpush1.msra.mxu0 0.0
        %1322 = vmatprep.subr.mxu0 0.0
        %1323 = vmatpush1.msra.mxu0 0.0
        %1324 = vmatprep.mubr.f32.mxu0 0.0
        %1325 = vmatmul.mubr.f32.gmra.mrb[0].mxu0 %v986
        %v1326 = vpop.f32.mrb[0].mxu0
        %v1327 = vadd.f32 %v1185, %v1326
        %v1328 = vpop.f32.mrb[0].mxu0
        %v1329 = vadd.f32 %v1187, %v1328
        %1330 = vdwg.mxu0
        %1331 = vmatprep.subr.mxu0 %v993
        %1332 = vmatpush1.msra.mxu0 %v992
        %1333 = vmatprep.subr.mxu0 %v997
        %1334 = vmatpush1.msra.mxu0 %v996
        %1335 = vmatprep.subr.mxu0 %v1001
        %1336 = vmatpush1.msra.mxu0 %v1000
        %1337 = vmatprep.subr.mxu0 %v1005
        %1338 = vmatpush1.msra.mxu0 %v1004
        %1339 = vmatprep.subr.mxu0 %v1009
        %1340 = vmatpush1.msra.mxu0 %v1008
        %1341 = vmatprep.subr.mxu0 %v1013
        %1342 = vmatpush1.msra.mxu0 %v1012
        %1343 = vmatprep.subr.mxu0 %v1017
        %1344 = vmatpush1.msra.mxu0 %v1016
        %1345 = vmatprep.subr.mxu0 %v1021
        %1346 = vmatpush1.msra.mxu0 %v1020
        %1347 = vmatprep.subr.mxu0 %v1025
        %1348 = vmatpush1.msra.mxu0 %v1024
        %1349 = vmatprep.subr.mxu0 %v1029
        %1350 = vmatpush1.msra.mxu0 %v1028
        %1351 = vmatprep.subr.mxu0 %v1033
        %1352 = vmatpush1.msra.mxu0 %v1032
        %1353 = vmatprep.subr.mxu0 %v1037
        %1354 = vmatpush1.msra.mxu0 %v1036
        %1355 = vmatprep.subr.mxu0 %v1041
        %1356 = vmatpush1.msra.mxu0 %v1040
        %1357 = vmatprep.subr.mxu0 %v1045
        %1358 = vmatpush1.msra.mxu0 %v1044
        %1359 = vmatprep.subr.mxu0 %v1049
        %1360 = vmatpush1.msra.mxu0 %v1048
        %1361 = vmatprep.subr.mxu0 %v1053
        %1362 = vmatpush1.msra.mxu0 %v1052
        %1363 = vmatprep.subr.mxu0 0.0
        %1364 = vmatpush1.msra.mxu0 0.0
        %1365 = vmatprep.subr.mxu0 0.0
        %1366 = vmatpush1.msra.mxu0 0.0
        %1367 = vmatprep.subr.mxu0 0.0
        %1368 = vmatpush1.msra.mxu0 0.0
        %1369 = vmatprep.subr.mxu0 0.0
        %1370 = vmatpush1.msra.mxu0 0.0
        %1371 = vmatprep.subr.mxu0 0.0
        %1372 = vmatpush1.msra.mxu0 0.0
        %1373 = vmatprep.subr.mxu0 0.0
        %1374 = vmatpush1.msra.mxu0 0.0
        %1375 = vmatprep.subr.mxu0 0.0
        %1376 = vmatpush1.msra.mxu0 0.0
        %1377 = vmatprep.subr.mxu0 0.0
        %1378 = vmatpush1.msra.mxu0 0.0
        %1379 = vmatprep.subr.mxu0 0.0
        %1380 = vmatpush1.msra.mxu0 0.0
        %1381 = vmatprep.subr.mxu0 0.0
        %1382 = vmatpush1.msra.mxu0 0.0
        %1383 = vmatprep.subr.mxu0 0.0
        %1384 = vmatpush1.msra.mxu0 0.0
        %1385 = vmatprep.subr.mxu0 0.0
        %1386 = vmatpush1.msra.mxu0 0.0
        %1387 = vmatprep.subr.mxu0 0.0
        %1388 = vmatpush1.msra.mxu0 0.0
        %1389 = vmatprep.subr.mxu0 0.0
        %1390 = vmatpush1.msra.mxu0 0.0
        %1391 = vmatprep.subr.mxu0 0.0
        %1392 = vmatpush1.msra.mxu0 0.0
        %1393 = vmatprep.subr.mxu0 0.0
        %1394 = vmatpush1.msra.mxu0 0.0
        %1395 = vmatprep.mubr.f32.mxu0 0.0
        %1396 = vmatmul.mubr.f32.gmra.mrb[0].mxu0 %v986
        %v1397 = vpop.f32.mrb[0].mxu0
        %v1398 = vadd.f32 %v1256, %v1397
        %v1399 = vpop.f32.mrb[0].mxu0
        %v1400 = vadd.f32 %v1258, %v1399
        %1401 = vdwg.mxu0
        %v1402 = vld [vmem:[%s6] sm:$0xf]
        %v1404 = vlaneseq
        %v1405 = vshrl.u32 %v1404, 7
        %v1406 = vsub.s32 0, %v1405
        %v1407 = vrot.slane %v1402, %v1406
        %v1408 = vlaneseq
        %v1409 = vshrl.u32 %v1408, 7
        %v1410 = vsub.s32 1, %v1409
        %v1411 = vrot.slane %v1402, %v1410
        %v1412 = vlaneseq
        %v1413 = vshrl.u32 %v1412, 7
        %v1414 = vsub.s32 2, %v1413
        %v1415 = vrot.slane %v1402, %v1414
        %v1416 = vlaneseq
        %v1417 = vshrl.u32 %v1416, 7
        %v1418 = vsub.s32 3, %v1417
        %v1419 = vrot.slane %v1402, %v1418
        %v1424 = vadd.f32 %v1327, %v1407
        %v1425 = vadd.f32 %v1329, %v1411
        %v1426 = vadd.f32 %v1398, %v1415
        %v1427 = vadd.f32 %v1400, %v1419
        %v1428 = vxor.u32 %v1424, 2147483648
        %v1429 = vmul.f32 %v1428, 1.442695
        %v1430 = vpow.pop %v1429
        %v1431 = vadd.f32 %v1430, 1.0
        %v1432 = vrcp.pop %v1431
        %v1433 = vmul.f32 1.0, %v1432
        %v1434 = vxor.u32 %v1425, 2147483648
        %v1435 = vmul.f32 %v1434, 1.442695
        %v1436 = vpow.pop %v1435
        %v1437 = vadd.f32 %v1436, 1.0
        %v1438 = vrcp.pop %v1437
        %v1439 = vmul.f32 1.0, %v1438
        %v1440 = vmul.f32 %v1433, %v1427
        %v1441 = vadd.f32 %v1426, %v1440
        %v1442 = vtanh.pop %v1441
        %v1443 = vsub.f32 1.0, %v1439
        %v1444 = vmul.f32 %v1443, %v1442
        %v1445 = vmul.f32 %v1439, %v989
        %v1446 = vadd.f32 %v1444, %v1445
        %1447 = vst [vmem:[%s988] sm:$0xff] %v1446
        %v1448 = vld [vmem:[#allocation9] sm:$0xff]
        %v1449 = vld [vmem:[#allocation9 + $0x8] sm:$0xff]
        %v1450 = vld [vmem:[#allocation9 + $0x10] sm:$0xff]
        %v1451 = vld [vmem:[#allocation9 + $0x18] sm:$0xff]
        %v1452 = vld [vmem:[#allocation9 + $0x20] sm:$0xff]
        %v1453 = vld [vmem:[#allocation9 + $0x28] sm:$0xff]
        %v1454 = vld [vmem:[#allocation9 + $0x30] sm:$0xff]
        %v1455 = vld [vmem:[#allocation9 + $0x38] sm:$0xff]
        %v1456 = vld [vmem:[#allocation9 + $0x40] sm:$0xff]
        %v1457 = vld [vmem:[#allocation9 + $0x48] sm:$0xff]
        %v1458 = vld [vmem:[#allocation9 + $0x50] sm:$0xff]
        %v1459 = vld [vmem:[#allocation9 + $0x58] sm:$0xff]
        %v1460 = vld [vmem:[#allocation9 + $0x60] sm:$0xff]
        %v1461 = vld [vmem:[#allocation9 + $0x68] sm:$0xff]
        %v1462 = vld [vmem:[#allocation9 + $0x70] sm:$0xff]
        %v1463 = vld [vmem:[#allocation9 + $0x78] sm:$0xff]
        %v1464 = vld [vmem:[%s8] sm:$0x1]
        %v1466 = vlaneseq
        %v1467 = vshrl.u32 %v1466, 7
        %v1468 = vsub.s32 0, %v1467
        %v1469 = vrot.slane %v1464, %v1468
        %1471 = vmatprep.subr.mxu0 0.0
        %1472 = vmatpush1.msra.mxu0 %v1448
        %1473 = vmatprep.subr.mxu0 0.0
        %1474 = vmatpush1.msra.mxu0 %v1449
        %1475 = vmatprep.subr.mxu0 0.0
        %1476 = vmatpush1.msra.mxu0 %v1450
        %1477 = vmatprep.subr.mxu0 0.0
        %1478 = vmatpush1.msra.mxu0 %v1451
        %1479 = vmatprep.subr.mxu0 0.0
        %1480 = vmatpush1.msra.mxu0 %v1452
        %1481 = vmatprep.subr.mxu0 0.0
        %1482 = vmatpush1.msra.mxu0 %v1453
        %1483 = vmatprep.subr.mxu0 0.0
        %1484 = vmatpush1.msra.mxu0 %v1454
        %1485 = vmatprep.subr.mxu0 0.0
        %1486 = vmatpush1.msra.mxu0 %v1455
        %1487 = vmatprep.subr.mxu0 0.0
        %1488 = vmatpush1.msra.mxu0 %v1456
        %1489 = vmatprep.subr.mxu0 0.0
        %1490 = vmatpush1.msra.mxu0 %v1457
        %1491 = vmatprep.subr.mxu0 0.0
        %1492 = vmatpush1.msra.mxu0 %v1458
        %1493 = vmatprep.subr.mxu0 0.0
        %1494 = vmatpush1.msra.mxu0 %v1459
        %1495 = vmatprep.subr.mxu0 0.0
        %1496 = vmatpush1.msra.mxu0 %v1460
        %1497 = vmatprep.subr.mxu0 0.0
        %1498 = vmatpush1.msra.mxu0 %v1461
        %1499 = vmatprep.subr.mxu0 0.0
        %1500 = vmatpush1.msra.mxu0 %v1462
        %1501 = vmatprep.subr.mxu0 0.0
        %1502 = vmatpush1.msra.mxu0 %v1463
        %1503 = vmatprep.subr.mxu0 0.0
        %1504 = vmatpush1.msra.mxu0 0.0
        %1505 = vmatprep.subr.mxu0 0.0
        %1506 = vmatpush1.msra.mxu0 0.0
        %1507 = vmatprep.subr.mxu0 0.0
        %1508 = vmatpush1.msra.mxu0 0.0
        %1509 = vmatprep.subr.mxu0 0.0
        %1510 = vmatpush1.msra.mxu0 0.0
        %1511 = vmatprep.subr.mxu0 0.0
        %1512 = vmatpush1.msra.mxu0 0.0
        %1513 = vmatprep.subr.mxu0 0.0
        %1514 = vmatpush1.msra.mxu0 0.0
        %1515 = vmatprep.subr.mxu0 0.0
        %1516 = vmatpush1.msra.mxu0 0.0
        %1517 = vmatprep.subr.mxu0 0.0
        %1518 = vmatpush1.msra.mxu0 0.0
        %1519 = vmatprep.subr.mxu0 0.0
        %1520 = vmatpush1.msra.mxu0 0.0
        %1521 = vmatprep.subr.mxu0 0.0
        %1522 = vmatpush1.msra.mxu0 0.0
        %1523 = vmatprep.subr.mxu0 0.0
        %1524 = vmatpush1.msra.mxu0 0.0
        %1525 = vmatprep.subr.mxu0 0.0
        %1526 = vmatpush1.msra.mxu0 0.0
        %1527 = vmatprep.subr.mxu0 0.0
        %1528 = vmatpush1.msra.mxu0 0.0
        %1529 = vmatprep.subr.mxu0 0.0
        %1530 = vmatpush1.msra.mxu0 0.0
        %1531 = vmatprep.subr.mxu0 0.0
        %1532 = vmatpush1.msra.mxu0 0.0
        %1533 = vmatprep.subr.mxu0 0.0
        %1534 = vmatpush1.msra.mxu0 0.0
        %1535 = vmatprep.mubr.f32.mxu0 0.0
        %1536 = vmatmul.mubr.f32.gmra.mrb[0].mxu0 %v1446
        %v1537 = vpop.f32.mrb[0].mxu0
        %v1538 = vadd.f32 %v1469, %v1537
        %v1539 = vpop.f32.mrb[0].mxu0
        %1540 = vdwg.mxu0
        %v1541 = vsel %vm432, 1, 0
        %1542 = vset.pattern.permute.xlu0 0
        %1543 = vperm.xlu0 %1542, %v1541
        %v1544 = vpop.permute.xlu0 %1543
        %vm1545 = vcmp.eq.s32.totalorder %v1544, 1
        %v1546 = vsel %vm1545, %v1538, 0.0
        %1547 = vst [vmem:[%s405] sm:$0xff] %v1546
        %v1548 = vsel %vm1545, %v1446, 0.0
        %1549 = vst [vmem:[%s409] sm:$0xff] %v1548
        %1550 = vmax.xlane.f32.xlu0 %v1538
        %v1551 = vpop.xlane.xlu0 %1550
        %v1552 = vcvt.s32.f32 %v435
        %vm1553 = vcmp.eq.f32.partialorder %v1538, %v1551
        %v1554 = vsel %vm1553, %v1552, 128.0
        %1555 = vmin.xlane.f32.xlu0 %v1554
        %v1556 = vpop.xlane.xlu0 %1555
        %v1557 = vcvt.f32.s32.to.zero.pseudo %v1556
        %v1558 = vld [vmem:[#allocation3] sm:$0xff]
        %vm1559 = vcmp.eq.s32.totalorder %v1557, 0
        %v1560 = vsel %vm1559, 1.0, 0.0
        %v1561 = vmax.f32 %v1558, %v1560
        %1562 = vst [vmem:[#allocation3] sm:$0xff] %v1561
        %p1563 = scmp.lt.s32.totalorder %s24, 7
        %s1564 = scalar_select %p1563, %s24, 7
        %s1565 = smul.addr %s1564, 8
        %s1566 = scalar_lea.vmem %s9, %s1565
        %p1567 = scmp.lt.s32.totalorder %s24, 7
        %s1568 = scalar_select %p1567, %s24, 7
        %s1569 = smul.addr %s1568, 8
        %s1570 = scalar_lea.vmem %s10, %s1569
        // Predicated region
        $region73: #{run.1} parent=55 // pred_check
          %p1571 = pneg %p236
        $region74: #{run.1} parent=55 // pred_check_branch
          %1573 = sbr.rel (%p1571) target = $region76
        $region75: #{run.1} parent=55 // pred_region
          _
        $region76: #{run.1} parent=55 // pred_fallthru
          _
        // Predicated region
        $region77: #{run.1} parent=55 // pred_check
          %p1574 = pneg %p262
        $region78: #{run.1} parent=55 // pred_check_branch
          %1576 = sbr.rel (%p1574) target = $region80
        $region79: #{run.1} parent=55 // pred_region
          _
        $region80: #{run.1} parent=55 // pred_fallthru
          _
      $region56: #{run.1} parent=5 // pred_fallthru
        _
      %p1577 = scmp.le.s32.totalorder 2, %s19
      // Predicated region
      $region81: #{run.1} parent=5 // pred_check
        %p1578 = pneg %p1577
      $region82: #{run.1} parent=5 // pred_check_branch
        %1580 = sbr.rel (%p1578) target = $region84
      $region83: #{run.1} parent=5 // pred_region
        %s1581 = ssub.s32 %s19, 2
        // Predicated region
        $region85: #{run.1} parent=83 // pred_check
          %p1582 = pneg %p242
        $region86: #{run.1} parent=83 // pred_check_branch
          %1584 = sbr.rel (%p1582) target = $region88
        $region87: #{run.1} parent=83 // pred_region
          %p1585 = scmp.lt.s32.totalorder %s25, 7
          %s1586 = scalar_select %p1585, %s25, 7
          %s1587 = smul.addr %s1586, 8
          %s1588 = scalar_lea.vmem %s9, %s1587
        $region88: #{run.1} parent=83 // pred_fallthru
          _
        // Predicated region
        $region89: #{run.1} parent=83 // pred_check
          %p1589 = pneg %p268
        $region90: #{run.1} parent=83 // pred_check_branch
          %1591 = sbr.rel (%p1589) target = $region92
        $region91: #{run.1} parent=83 // pred_region
          %p1592 = scmp.lt.s32.totalorder %s25, 7
          %s1593 = scalar_select %p1592, %s25, 7
          %s1594 = smul.addr %s1593, 8
          %s1595 = scalar_lea.vmem %s10, %s1594
        $region92: #{run.1} parent=83 // pred_fallthru
          _
      $region84: #{run.1} parent=5 // pred_fallthru
        _
    $region6: #{run.1} parent=1 // loop_footer
      %s23 = sadd.s32 1, %s19
    $region7: #{run.1} parent=1 // loop_footer_branch
      %18 = sbr.rel target = $region3
    $region8: #{run.1} parent=1 // loop_exit
      _
    %1596 = vsyncpa [#allocation6], 1
    %s1597 = scalar_lea.sflag [#allocation6], 1
    %1598 = vsyncpa %s1597, 1
    %1599 = vsyncpa [#allocation8], 1

</llo_original>
